<compile_context>
chip_gen: v7x
topology: tpu7x:2x2x1
jax: 0.10.0
libtpu: 0.0.40
codegen_flags: <defaults>
</compile_context>

<pallas_src>
import functools

import jax
import jax.numpy as jnp
from jax.experimental import pallas as pl
from jax.experimental.pallas import tpu as pltpu

_EPS = 1e-5


def _round_up(x, m):
    return ((x + m - 1) // m) * m


# ---------------------------------------------------------------------------
# Kernels
# ---------------------------------------------------------------------------
def _h_tile(x_ref, w1_ref, b1_ref):
    """h = relu(x @ W1 + b1) for the current batch tile (f32 accumulation).

    x is read in its original f32 form and cast to the MXU dtype in-kernel
    (free VPU filler) -- avoids a wrapper-side astype round trip over HBM.
    Bias-add / relu stay f32 (v5e-safe).
    """
    x = x_ref[...].astype(w1_ref.dtype)
    h = jnp.dot(x, w1_ref[...], preferred_element_type=jnp.float32)
    return jnp.maximum(h + b1_ref[...], 0.0)


def stats_kernel(x_ref, w1_ref, b1_ref, s_ref, g_ref, *,
                 batch, tile, nb2, needs_mask):
    """Pass 1: per-core partial sum(h) and Gram matrix h^T h over the batch.

    Grid = (2, nb2): leading axis is 'parallel' (one accumulator slot per v7x
    TensorCore), trailing axis is the 'arbitrary' batch-tile loop.
    """
    i = pl.program_id(1)

    @pl.when(i == 0)
    def _():
        s_ref[...] = jnp.zeros_like(s_ref)
        g_ref[...] = jnp.zeros_like(g_ref)

    h = _h_tile(x_ref, w1_ref, b1_ref)

    if needs_mask:  # static: only emitted when padded / duplicated tiles exist
        t = pl.program_id(0) * nb2 + i                       # logical tile idx
        rows = jax.lax.broadcasted_iota(jnp.int32, h.shape, 0) + t * tile
        h = jnp.where(rows < batch, h, 0.0)

    # f32 stat accumulation (review: keep stats in f32). The Gram matmul
    # contracts the batch axis on the (otherwise idle) MXU.
    s_ref[0] += jnp.sum(h, axis=0, keepdims=True)
    g_ref[0] += jax.lax.dot_general(
        h, h, (((0,), (0,)), ((), ())), preferred_element_type=jnp.float32)


def final_kernel(x_ref, w1_ref, b1_ref, wf_ref, cf_ref, o_ref):
    """Pass 2: out = sigmoid(h @ W_fold + c_fold), un-padded lane store.

    W_fold / c_fold fold BN1-affine, Linear2 and BN2-affine into one matmul.
    """
    h = _h_tile(x_ref, w1_ref, b1_ref)
    z = jnp.dot(h.astype(wf_ref.dtype), wf_ref[...],
                preferred_element_type=jnp.float32) + cf_ref[...]
    o_ref[...] = jax.nn.sigmoid(z)


# ---------------------------------------------------------------------------
# Wrapper
# ---------------------------------------------------------------------------
@functools.partial(jax.jit, static_argnames=("tile_b", "matmul_dtype"))
def receiver_forward(x, w1, b1, g1, be1, w2, b2, g2, be2,
                     *, tile_b=2048, matmul_dtype=jnp.bfloat16):
    """Forward pass of `Receiver` with training-mode (batch-statistics) BatchNorm.

    `b2` is accepted for API parity with nn.Linear but unused: a Linear bias
    feeding straight into training-mode BatchNorm is cancelled exactly by the
    batch-mean subtraction (b1 is kept: ReLU sits between it and BN1).
    """
    del b2
    B, IN = x.shape
    H = w1.shape[1]
    O = w2.shape[1]

    # --- batch tiling (8-sublane granule); no wrapper-side padding of x ---
    tile = min(_round_up(B, 8), _round_up(tile_b, 8))
    nb = pl.cdiv(B, tile)           # real batch tiles
    nb2 = pl.cdiv(nb, 2)            # tiles per core-slice in the stats pass
    needs_mask = (2 * nb2 * tile != B)

    # Only MXU operands in matmul_dtype; everything else f32.
    w1_mx = w1.astype(matmul_dtype)
    b1f = b1.astype(jnp.float32)

    def full2(a):   # whole-array resident block (2-D grid)
        return pl.BlockSpec(a.shape, lambda c, i: (0,) * a.ndim)

    def full1(a):   # whole-array resident block (1-D grid)
        return pl.BlockSpec(a.shape, lambda i: (0,) * a.ndim)

    # ---- pass 1: partial (per-core) sum(h) and Gram(h) over the batch ----
    x_stats_spec = pl.BlockSpec(
        (tile, IN),
        lambda c, i: (jnp.minimum(c * nb2 + i, nb - 1), 0))  # clamp dup tiles

    s_part, g_part = pl.pallas_call(
        functools.partial(stats_kernel, batch=B, tile=tile, nb2=nb2,
                          needs_mask=needs_mask),
        out_shape=(jax.ShapeDtypeStruct((2, 1, H), jnp.float32),
                   jax.ShapeDtypeStruct((2, H, H), jnp.float32)),
        grid=(2, nb2),
        in_specs=[x_stats_spec, full2(w1_mx), full2(b1f)],
        out_specs=(pl.BlockSpec((1, 1, H), lambda c, i: (c, 0, 0)),
                   pl.BlockSpec((1, H, H), lambda c, i: (c, 0, 0))),
        compiler_params=pltpu.CompilerParams(
            dimension_semantics=("parallel", "arbitrary")),
    )(x, w1_mx, b1f)

    # ---- tiny XLA finalisation: BN1 stats, analytic BN2 stats, fold layer 2 ----
    hd = lambda a, b: jnp.dot(a, b, precision="highest")
    Bf = jnp.float32(B)
    s = s_part.sum(axis=0)                              # (1, H)
    G = g_part.sum(axis=0)                              # (H, H)

    mu1 = s / Bf
    var1 = jnp.maximum(jnp.diagonal(G)[None, :] / Bf - mu1 * mu1, 0.0)
    a1 = g1 * jax.lax.rsqrt(var1 + _EPS)                # folded BN1 affine
    c1 = be1 - mu1 * a1

    w2f = w2.astype(jnp.float32)
    W2p = a1.reshape(H, 1) * w2f                        # diag(a1) @ W2   (H, O)
    d = hd(c1, w2f)                                     # c1 @ W2         (1, O)
    sW = hd(s, W2p)                                     # (1, O)
    sum_y = sW + Bf * d
    sumsq_y = (jnp.sum(W2p * hd(G, W2p), axis=0, keepdims=True)
               + 2.0 * d * sW + Bf * d * d)

    mu2 = sum_y / Bf
    var2 = jnp.maximum(sumsq_y / Bf - mu2 * mu2, 0.0)
    a2 = g2 * jax.lax.rsqrt(var2 + _EPS)                # folded BN2 affine
    c2 = be2 - mu2 * a2

    W_fold = (W2p * a2).astype(matmul_dtype)            # (H, O) single matmul
    c_fold = (d * a2 + c2).astype(jnp.float32)          # (1, O)

    # ---- pass 2: normalize + sigmoid; un-padded (tile, O) f32 store ----
    out = pl.pallas_call(
        final_kernel,
        out_shape=jax.ShapeDtypeStruct((B, O), jnp.float32),
        grid=(nb,),
        in_specs=[pl.BlockSpec((tile, IN), lambda i: (i, 0)),
                  full1(w1_mx), full1(b1f), full1(W_fold), full1(c_fold)],
        out_specs=pl.BlockSpec((tile, O), lambda i: (i, 0)),
        compiler_params=pltpu.CompilerParams(
            dimension_semantics=("parallel",)),
    )(x, w1_mx, b1f, W_fold, c_fold)

    return out


# ---------------------------------------------------------------------------
# Parameter init (mirrors nn.Linear / nn.BatchNorm1d defaults) and reference
# ---------------------------------------------------------------------------
def init_params(key, input_size, hidden_size, output_size):
    """nn.Linear default init U(-1/sqrt(fan_in), 1/sqrt(fan_in)); weights stored
    (fan_in, fan_out) so kernels do x @ W directly. BN: gamma=1, beta=0."""
    k1, k2, k3, k4 = jax.random.split(key, 4)
    bound1 = 1.0 / jnp.sqrt(input_size)
    bound2 = 1.0 / jnp.sqrt(hidden_size)
    w1 = jax.random.uniform(k1, (input_size, hidden_size), jnp.float32, -bound1, bound1)
    b1 = jax.random.uniform(k2, (1, hidden_size), jnp.float32, -bound1, bound1)
    w2 = jax.random.uniform(k3, (hidden_size, output_size), jnp.float32, -bound2, bound2)
    b2 = jax.random.uniform(k4, (1, output_size), jnp.float32, -bound2, bound2)
    g1 = jnp.ones((1, hidden_size), jnp.float32)
    be1 = jnp.zeros((1, hidden_size), jnp.float32)
    g2 = jnp.ones((1, output_size), jnp.float32)
    be2 = jnp.zeros((1, output_size), jnp.float32)
    return w1, b1, g1, be1, w2, b2, g2, be2


def reference_forward(x, w1, b1, g1, be1, w2, b2, g2, be2):
    """Pure-JAX f32 reference matching PyTorch training-mode forward exactly."""
    mm = lambda a, b: jnp.dot(a, b, precision="highest")
    h = jnp.maximum(mm(x, w1) + b1, 0.0)
    mu1 = h.mean(0, keepdims=True)
    v1 = ((h - mu1) ** 2).mean(0, keepdims=True)
    h = (h - mu1) / jnp.sqrt(v1 + _EPS) * g1 + be1
    y = mm(h, w2) + b2
    mu2 = y.mean(0, keepdims=True)
    v2 = ((y - mu2) ** 2).mean(0, keepdims=True)
    y = (y - mu2) / jnp.sqrt(v2 + _EPS) * g2 + be2
    return jax.nn.sigmoid(y)


if __name__ == "__main__":
    # Small shapes, chosen so multi-tile accumulation, the ragged last tile,
    # the per-core partial stats and the single-tile path are all exercised.
    batch, input_size, hidden_size, output_size = 300, 16, 32, 8

    key = jax.random.PRNGKey(0)
    kx, kp = jax.random.split(key)
    x = jax.random.normal(kx, (batch, input_size), jnp.float32)
    params = init_params(kp, input_size, hidden_size, output_size)

    ref = reference_forward(x, *params)

    # Exact-semantics path (f32 MXU operands), small tiles -> 3 batch tiles.
    out_f32 = jax.block_until_ready(
        receiver_forward(x, *params, tile_b=128, matmul_dtype=jnp.float32))
    assert out_f32.shape == (batch, output_size)
    assert jnp.max(jnp.abs(out_f32 - ref)) < 1e-3, "f32 kernel mismatch"

    # Performance path (bf16 MXU operands, f32 accumulation), small tiles.
    out_bf16 = jax.block_until_ready(
        receiver_forward(x, *params, tile_b=128))
    assert out_bf16.shape == (batch, output_size)
    assert jnp.max(jnp.abs(out_bf16 - ref)) < 3e-2, "bf16 kernel mismatch"

    # Default (large) tile path: single tile per core-slice.
    out_big = jax.block_until_ready(receiver_forward(x, *params))
    assert jnp.max(jnp.abs(out_big - ref)) < 3e-2, "bf16 large-tile mismatch"

    print("KERNEL_OK")
</pallas_src>

<mosaic_0001>
module attributes {stable_mosaic.version = 11 : i64} {
  func.func @stats_kernel(%arg0: i32, %arg1: i32, %arg2: memref<128x16xf32, #tpu.memory_space<vmem>>, %arg3: memref<16x32xf32, #tpu.memory_space<vmem>>, %arg4: memref<1x32xf32, #tpu.memory_space<vmem>>, %arg5: memref<1x1x32xf32, #tpu.memory_space<vmem>>, %arg6: memref<1x32x32xf32, #tpu.memory_space<vmem>>) attributes {dimension_semantics = [#tpu.dimension_semantics<parallel>, #tpu.dimension_semantics<arbitrary>], iteration_bounds = array<i64: 2, 2>, scalar_prefetch = 0 : i64, scratch_operands = 0 : i64, tpu.core_type = #tpu.core_type<tc>, window_params = [{transform_indices = @transform_0, window_bounds = array<i64: 128, 16>}, {pipeline_mode = #tpu.pipeline_mode<synchronous>, transform_indices = @transform_1, window_bounds = array<i64: 16, 32>}, {pipeline_mode = #tpu.pipeline_mode<synchronous>, transform_indices = @transform_2, window_bounds = array<i64: 1, 32>}, {transform_indices = @transform_3, window_bounds = array<i64: 1, 1, 32>}, {transform_indices = @transform_4, window_bounds = array<i64: 1, 32, 32>}]} {
    %c0_i32 = arith.constant 0 : i32
    %0 = arith.cmpi eq, %arg1, %c0_i32 : i32
    %1 = arith.extui %0 : i1 to i32
    %c0_i32_0 = arith.constant 0 : i32
    %2 = arith.cmpi ne, %1, %c0_i32_0 : i32
    scf.if %2 {
      %cst_22 = arith.constant 0.000000e+00 : f32
      %36 = vector.broadcast %cst_22 : f32 to vector<1x1x32xf32>
      %c0_23 = arith.constant 0 : index
      %c0_24 = arith.constant 0 : index
      %c0_25 = arith.constant 0 : index
      %37 = vector.load %arg5[%c0_23, %c0_24, %c0_25] : memref<1x1x32xf32, #tpu.memory_space<vmem>>, vector<1x1x32xf32>
      tpu.vector_store %arg5[%c0_23, %c0_24, %c0_25], %36 {strides = array<i32>} : memref<1x1x32xf32, #tpu.memory_space<vmem>>, vector<1x1x32xf32>,
      %cst_26 = arith.constant 0.000000e+00 : f32
      %38 = vector.broadcast %cst_26 : f32 to vector<1x32x32xf32>
      %c0_27 = arith.constant 0 : index
      %c0_28 = arith.constant 0 : index
      %c0_29 = arith.constant 0 : index
      %39 = vector.load %arg6[%c0_27, %c0_28, %c0_29] : memref<1x32x32xf32, #tpu.memory_space<vmem>>, vector<1x32x32xf32>
      tpu.vector_store %arg6[%c0_27, %c0_28, %c0_29], %38 {strides = array<i32>} : memref<1x32x32xf32, #tpu.memory_space<vmem>>, vector<1x32x32xf32>,
    } else {
    }
    %c0 = arith.constant 0 : index
    %c0_1 = arith.constant 0 : index
    %3 = vector.load %arg2[%c0, %c0_1] : memref<128x16xf32, #tpu.memory_space<vmem>>, vector<128x16xf32>
    %c0_2 = arith.constant 0 : index
    %c0_3 = arith.constant 0 : index
    %4 = vector.load %arg3[%c0_2, %c0_3] : memref<16x32xf32, #tpu.memory_space<vmem>>, vector<16x32xf32>
    %cst = arith.constant dense<0.000000e+00> : vector<128x32xf32>
    %5 = tpu.matmul %3, %4, %cst {dimension_numbers = #tpu.dot_dimension_numbers<[1], [0], [0], [1], [0, 0, 1, 1], [], []>} : vector<128x16xf32>, vector<16x32xf32>, vector<128x32xf32> -> vector<128x32xf32>
    %c0_4 = arith.constant 0 : index
    %c0_5 = arith.constant 0 : index
    %6 = vector.load %arg4[%c0_4, %c0_5] : memref<1x32xf32, #tpu.memory_space<vmem>>, vector<1x32xf32>
    %7 = vector.broadcast %6 : vector<1x32xf32> to vector<128x32xf32>
    %8 = arith.addf %5, %7 : vector<128x32xf32>
    %cst_6 = arith.constant 0.000000e+00 : f32
    %9 = vector.broadcast %cst_6 : f32 to vector<128x32xf32>
    %10 = arith.maximumf %8, %9 : vector<128x32xf32>
    %c2_i32 = arith.constant 2 : i32
    %11 = arith.muli %arg0, %c2_i32 : i32
    %12 = arith.addi %11, %arg1 : i32
    %13 = tpu.iota {dimensions = array<i32: 0>} : vector<128x32xi32>
    %c128_i32 = arith.constant 128 : i32
    %14 = arith.muli %12, %c128_i32 : i32
    %15 = vector.broadcast %14 : i32 to vector<128x32xi32>
    %16 = arith.addi %13, %15 : vector<128x32xi32>
    %c300_i32 = arith.constant 300 : i32
    %17 = vector.broadcast %c300_i32 : i32 to vector<128x32xi32>
    %18 = arith.cmpi slt, %16, %17 : vector<128x32xi32>
    %cst_7 = arith.constant 0.000000e+00 : f32
    %19 = vector.broadcast %cst_7 : f32 to vector<128x32xf32>
    %20 = arith.select %18, %10, %19 : vector<128x32xi1>, vector<128x32xf32>
    %c0_8 = arith.constant 0 : index
    %c0_9 = arith.constant 0 : index
    %c0_10 = arith.constant 0 : index
    %21 = vector.load %arg5[%c0_8, %c0_9, %c0_10] : memref<1x1x32xf32, #tpu.memory_space<vmem>>, vector<1x1x32xf32>
    %22 = vector.shape_cast %21 : vector<1x1x32xf32> to vector<1x32xf32>
    %cst_11 = arith.constant dense<0.000000e+00> : vector<32xf32>
    %23 = vector.multi_reduction <add>, %20, %cst_11 [0] : vector<128x32xf32> to vector<32xf32>
    %24 = vector.shape_cast %23 : vector<32xf32> to vector<1x32xf32>
    %25 = arith.addf %22, %24 : vector<1x32xf32>
    %c0_12 = arith.constant 0 : index
    %c0_13 = arith.constant 0 : index
    %c0_14 = arith.constant 0 : index
    %26 = vector.load %arg5[%c0_12, %c0_13, %c0_14] : memref<1x1x32xf32, #tpu.memory_space<vmem>>, vector<1x1x32xf32>
    %27 = vector.shape_cast %26 : vector<1x1x32xf32> to vector<1x32xf32>
    %28 = vector.shape_cast %25 : vector<1x32xf32> to vector<1x1x32xf32>
    tpu.vector_store %arg5[%c0_12, %c0_13, %c0_14], %28 {strides = array<i32>} : memref<1x1x32xf32, #tpu.memory_space<vmem>>, vector<1x1x32xf32>,
    %c0_15 = arith.constant 0 : index
    %c0_16 = arith.constant 0 : index
    %c0_17 = arith.constant 0 : index
    %29 = vector.load %arg6[%c0_15, %c0_16, %c0_17] : memref<1x32x32xf32, #tpu.memory_space<vmem>>, vector<1x32x32xf32>
    %30 = vector.shape_cast %29 : vector<1x32x32xf32> to vector<32x32xf32>
    %cst_18 = arith.constant dense<0.000000e+00> : vector<32x32xf32>
    %31 = tpu.matmul %20, %20, %cst_18 {dimension_numbers = #tpu.dot_dimension_numbers<[0], [0], [1], [1], [0, 1, 1, 1], [], []>} : vector<128x32xf32>, vector<128x32xf32>, vector<32x32xf32> -> vector<32x32xf32>
    %32 = arith.addf %30, %31 : vector<32x32xf32>
    %c0_19 = arith.constant 0 : index
    %c0_20 = arith.constant 0 : index
    %c0_21 = arith.constant 0 : index
    %33 = vector.load %arg6[%c0_19, %c0_20, %c0_21] : memref<1x32x32xf32, #tpu.memory_space<vmem>>, vector<1x32x32xf32>
    %34 = vector.shape_cast %33 : vector<1x32x32xf32> to vector<32x32xf32>
    %35 = vector.shape_cast %32 : vector<32x32xf32> to vector<1x32x32xf32>
    tpu.vector_store %arg6[%c0_19, %c0_20, %c0_21], %35 {strides = array<i32>} : memref<1x32x32xf32, #tpu.memory_space<vmem>>, vector<1x32x32xf32>,
    return
  }
  func.func @transform_0(%arg0: i32, %arg1: i32) -> (i32, i32) {
    %c2_i32 = arith.constant 2 : i32
    %0 = arith.muli %arg0, %c2_i32 : i32
    %1 = arith.addi %0, %arg1 : i32
    %c2_i32_0 = arith.constant 2 : i32
    %2 = arith.minsi %1, %c2_i32_0 : i32
    %c0_i32 = arith.constant 0 : i32
    %c0_i32_1 = arith.constant 0 : i32
    return %2, %c0_i32 : i32, i32
  }
  func.func @transform_1(%arg0: i32, %arg1: i32) -> (i32, i32) {
    %c0_i32 = arith.constant 0 : i32
    %c0_i32_0 = arith.constant 0 : i32
    %c0_i32_1 = arith.constant 0 : i32
    return %c0_i32, %c0_i32_0 : i32, i32
  }
  func.func @transform_2(%arg0: i32, %arg1: i32) -> (i32, i32) {
    %c0_i32 = arith.constant 0 : i32
    %c0_i32_0 = arith.constant 0 : i32
    %c0_i32_1 = arith.constant 0 : i32
    return %c0_i32, %c0_i32_0 : i32, i32
  }
  func.func @transform_3(%arg0: i32, %arg1: i32) -> (i32, i32, i32) {
    %c0_i32 = arith.constant 0 : i32
    %c0_i32_0 = arith.constant 0 : i32
    %c0_i32_1 = arith.constant 0 : i32
    return %arg0, %c0_i32, %c0_i32_0 : i32, i32, i32
  }
  func.func @transform_4(%arg0: i32, %arg1: i32) -> (i32, i32, i32) {
    %c0_i32 = arith.constant 0 : i32
    %c0_i32_0 = arith.constant 0 : i32
    %c0_i32_1 = arith.constant 0 : i32
    return %arg0, %c0_i32, %c0_i32_0 : i32, i32, i32
  }
}

module attributes {stable_mosaic.version = 11 : i64} {
  func.func @final_kernel(%arg0: i32, %arg1: memref<128x16xf32, #tpu.memory_space<vmem>>, %arg2: memref<16x32xf32, #tpu.memory_space<vmem>>, %arg3: memref<1x32xf32, #tpu.memory_space<vmem>>, %arg4: memref<32x8xf32, #tpu.memory_space<vmem>>, %arg5: memref<1x8xf32, #tpu.memory_space<vmem>>, %arg6: memref<128x8xf32, #tpu.memory_space<vmem>>) attributes {dimension_semantics = [#tpu.dimension_semantics<parallel>], iteration_bounds = array<i64: 3>, scalar_prefetch = 0 : i64, scratch_operands = 0 : i64, tpu.core_type = #tpu.core_type<tc>, window_params = [{transform_indices = @transform_0, window_bounds = array<i64: 128, 16>}, {pipeline_mode = #tpu.pipeline_mode<synchronous>, transform_indices = @transform_1, window_bounds = array<i64: 16, 32>}, {pipeline_mode = #tpu.pipeline_mode<synchronous>, transform_indices = @transform_2, window_bounds = array<i64: 1, 32>}, {pipeline_mode = #tpu.pipeline_mode<synchronous>, transform_indices = @transform_3, window_bounds = array<i64: 32, 8>}, {pipeline_mode = #tpu.pipeline_mode<synchronous>, transform_indices = @transform_4, window_bounds = array<i64: 1, 8>}, {transform_indices = @transform_5, window_bounds = array<i64: 128, 8>}]} {
    %c0 = arith.constant 0 : index
    %c0_0 = arith.constant 0 : index
    %0 = vector.load %arg1[%c0, %c0_0] : memref<128x16xf32, #tpu.memory_space<vmem>>, vector<128x16xf32>
    %c0_1 = arith.constant 0 : index
    %c0_2 = arith.constant 0 : index
    %1 = vector.load %arg2[%c0_1, %c0_2] : memref<16x32xf32, #tpu.memory_space<vmem>>, vector<16x32xf32>
    %cst = arith.constant dense<0.000000e+00> : vector<128x32xf32>
    %2 = tpu.matmul %0, %1, %cst {dimension_numbers = #tpu.dot_dimension_numbers<[1], [0], [0], [1], [0, 0, 1, 1], [], []>} : vector<128x16xf32>, vector<16x32xf32>, vector<128x32xf32> -> vector<128x32xf32>
    %c0_3 = arith.constant 0 : index
    %c0_4 = arith.constant 0 : index
    %3 = vector.load %arg3[%c0_3, %c0_4] : memref<1x32xf32, #tpu.memory_space<vmem>>, vector<1x32xf32>
    %4 = vector.broadcast %3 : vector<1x32xf32> to vector<128x32xf32>
    %5 = arith.addf %2, %4 : vector<128x32xf32>
    %cst_5 = arith.constant 0.000000e+00 : f32
    %6 = vector.broadcast %cst_5 : f32 to vector<128x32xf32>
    %7 = arith.maximumf %5, %6 : vector<128x32xf32>
    %c0_6 = arith.constant 0 : index
    %c0_7 = arith.constant 0 : index
    %8 = vector.load %arg4[%c0_6, %c0_7] : memref<32x8xf32, #tpu.memory_space<vmem>>, vector<32x8xf32>
    %cst_8 = arith.constant dense<0.000000e+00> : vector<128x8xf32>
    %9 = tpu.matmul %7, %8, %cst_8 {dimension_numbers = #tpu.dot_dimension_numbers<[1], [0], [0], [1], [0, 0, 1, 1], [], []>} : vector<128x32xf32>, vector<32x8xf32>, vector<128x8xf32> -> vector<128x8xf32>
    %c0_9 = arith.constant 0 : index
    %c0_10 = arith.constant 0 : index
    %10 = vector.load %arg5[%c0_9, %c0_10] : memref<1x8xf32, #tpu.memory_space<vmem>>, vector<1x8xf32>
    %11 = vector.broadcast %10 : vector<1x8xf32> to vector<128x8xf32>
    %12 = arith.addf %9, %11 : vector<128x8xf32>
    %13 = arith.negf %12 : vector<128x8xf32>
    %14 = math.exp %13 : vector<128x8xf32>
    %cst_11 = arith.constant 1.000000e+00 : f32
    %15 = vector.broadcast %cst_11 : f32 to vector<128x8xf32>
    %16 = arith.addf %15, %14 : vector<128x8xf32>
    %17 = arith.divf %15, %16 : vector<128x8xf32>
    %c0_12 = arith.constant 0 : index
    %c0_13 = arith.constant 0 : index
    %18 = vector.load %arg6[%c0_12, %c0_13] : memref<128x8xf32, #tpu.memory_space<vmem>>, vector<128x8xf32>
    tpu.vector_store %arg6[%c0_12, %c0_13], %17 {strides = array<i32>} : memref<128x8xf32, #tpu.memory_space<vmem>>, vector<128x8xf32>,
    return
  }
  func.func @transform_0(%arg0: i32) -> (i32, i32) {
    %c0_i32 = arith.constant 0 : i32
    %c0_i32_0 = arith.constant 0 : i32
    return %arg0, %c0_i32 : i32, i32
  }
  func.func @transform_1(%arg0: i32) -> (i32, i32) {
    %c0_i32 = arith.constant 0 : i32
    %c0_i32_0 = arith.constant 0 : i32
    %c0_i32_1 = arith.constant 0 : i32
    return %c0_i32, %c0_i32_0 : i32, i32
  }
  func.func @transform_2(%arg0: i32) -> (i32, i32) {
    %c0_i32 = arith.constant 0 : i32
    %c0_i32_0 = arith.constant 0 : i32
    %c0_i32_1 = arith.constant 0 : i32
    return %c0_i32, %c0_i32_0 : i32, i32
  }
  func.func @transform_3(%arg0: i32) -> (i32, i32) {
    %c0_i32 = arith.constant 0 : i32
    %c0_i32_0 = arith.constant 0 : i32
    %c0_i32_1 = arith.constant 0 : i32
    return %c0_i32, %c0_i32_0 : i32, i32
  }
  func.func @transform_4(%arg0: i32) -> (i32, i32) {
    %c0_i32 = arith.constant 0 : i32
    %c0_i32_0 = arith.constant 0 : i32
    %c0_i32_1 = arith.constant 0 : i32
    return %c0_i32, %c0_i32_0 : i32, i32
  }
  func.func @transform_5(%arg0: i32) -> (i32, i32) {
    %c0_i32 = arith.constant 0 : i32
    %c0_i32_0 = arith.constant 0 : i32
    return %arg0, %c0_i32 : i32, i32
  }
}

</mosaic_0001>

<llo_original>
// kernel: receiver_forward.2
$region0: #{receiver_forward.2}
  #allocation0 [shape = 'u32[]', space=smem, size = 0x4, offset = 0x4, fixed_abs, tag = 'smem constant byte address 0x4 - core index']
  #allocation1 [shape = 'u32[144,128]{1,0:T(1,128)}', space=vmem, size = 0x12000, scoped, tag = 'internal scratch']
  %s0 = inlined_call_operand.vmem [shape: f32[300,16], index: 0, kind: input, shape index: {}]
  %s1 = inlined_call_operand.vmem [shape: f32[16,32], index: 1, kind: input, shape index: {}]
  %s2 = inlined_call_operand.vmem [shape: f32[1,32], index: 2, kind: input, shape index: {}]
  %s3 = inlined_call_operand.vmem [shape: f32[2,1,32], index: 3, kind: output, shape index: {0}]
  %s4 = inlined_call_operand.vmem [shape: f32[2,32,32], index: 4, kind: output, shape index: {1}]
  %5 = xla_tuple %s3, %s4
  %s6 = sld [smem:[#allocation0]]
  $region57: #{receiver_forward.2} parent=0
    _
  %s8 = ssub.s32 1, %s6
  %s9 = scalar_select 0, %s8, %s6
  loop: start=0, step=1, limit=6
  $region2: #{receiver_forward.2} parent=0 // loop_pre_header
    _
  $region3: #{receiver_forward.2} parent=0 // loop_header
    %s11 = sphi 0, %s15
    %p12 = scmp.ge.s32.totalorder %s11, 6
    %s18 = sphi 0, %s30
    %s19 = sphi 0, %s26
    %s20 = sphi 0, %s18
    %s21 = sphi 0, %s19
    %s22 = sphi 0, %s20
    %s23 = sphi 0, %s21
    %s41 = sphi 0, %s43
    %s44 = sphi 0, %s41
    %s45 = sphi 0, %s44
    %s61 = sphi 0, %s45
    %s65 = sphi 0, %s65
    %s67 = sphi 0, %s65
    %s68 = sphi 0, %s67
    %s82 = sphi 0, %s68
    %s86 = sphi 0, %s86
    %s88 = sphi 0, %s86
    %s89 = sphi 0, %s88
    %s103 = sphi 0, %s89
    %s109 = sphi 0, %s111
    %s112 = sphi 0, %s109
    %s113 = sphi 0, %s112
    %s129 = sphi 0, %s113
    %s135 = sphi 0, %s137
    %s138 = sphi 0, %s135
    %s139 = sphi 0, %s138
    %s155 = sphi 0, %s139
  $region4: #{receiver_forward.2} parent=0 // loop_header_branch
    %14 = sbr.rel (%p12) target = $region8
  $region5: #{receiver_forward.2} parent=0 // loop_body
    %s16 = ssub.s32 %s11, 1
    %s17 = ssub.s32 %s11, 2
    %s24 = sadd.s32 1, %s19
    %p25 = scmp.ge.s32.totalorder %s24, 2
    %s26 = scalar_select %p25, 0, %s24
    %s27 = sadd.s32 1, %s18
    %s28 = scalar_select %p25, %s27, %s18
    %p29 = scmp.ge.s32.totalorder %s28, 2
    %s30 = scalar_select %p29, 0, %s28
    %s31 = smul.u32 %s18, 2
    %s32 = sadd.s32 %s31, %s19
    %p33 = scmp.lt.s32.totalorder %s32, 2
    %s34 = scalar_select %p33, %s32, 2
    %s35 = smul.u32 %s30, 2
    %s36 = sadd.s32 %s35, %s26
    %p37 = scmp.lt.s32.totalorder %s36, 2
    %s38 = scalar_select %p37, %s36, 2
    %s39 = ssub.s32 %s34, %s38
    %p40 = scmp.eq.s32.totalorder %s39, 0
    %s42 = sadd.s32 %s41, 1
    %s43 = scalar_select %p40, %s41, %s42
    %p46 = pneg %p40
    %p47 = scmp.eq.s32.totalorder %s11, 3
    %p48 = por %p46, %p47
    %p49 = scmp.ne.s32.totalorder %s41, %s44
    %p50 = scmp.eq.s32.totalorder %s11, 0
    %p51 = por %p49, %p50
    %p52 = scmp.ne.s32.totalorder %s41, %s44
    %p53 = scmp.eq.s32.totalorder %s16, 3
    %p54 = por %p52, %p53
    %p55 = scmp.ne.s32.totalorder %s44, %s45
    %p56 = scmp.eq.s32.totalorder %s16, 0
    %p57 = por %p55, %p56
    %p58 = scmp.ne.s32.totalorder %s44, %s45
    %p59 = scmp.eq.s32.totalorder %s17, 3
    %p60 = por %p58, %p59
    %p62 = scmp.ne.s32.totalorder %s45, %s61
    %p63 = scmp.eq.s32.totalorder %s17, 0
    %p64 = por %p62, %p63
    %s66 = sadd.s32 %s65, 1
    %p69 = scmp.eq.s32.totalorder %s11, 3
    %p70 = scmp.ne.s32.totalorder %s65, %s67
    %p71 = scmp.eq.s32.totalorder %s11, 0
    %p72 = por %p70, %p71
    %p73 = scmp.ne.s32.totalorder %s65, %s67
    %p74 = scmp.eq.s32.totalorder %s16, 3
    %p75 = por %p73, %p74
    %p76 = scmp.ne.s32.totalorder %s67, %s68
    %p77 = scmp.eq.s32.totalorder %s16, 0
    %p78 = por %p76, %p77
    %p79 = scmp.ne.s32.totalorder %s67, %s68
    %p80 = scmp.eq.s32.totalorder %s17, 3
    %p81 = por %p79, %p80
    %p83 = scmp.ne.s32.totalorder %s68, %s82
    %p84 = scmp.eq.s32.totalorder %s17, 0
    %p85 = por %p83, %p84
    %s87 = sadd.s32 %s86, 1
    %p90 = scmp.eq.s32.totalorder %s11, 3
    %p91 = scmp.ne.s32.totalorder %s86, %s88
    %p92 = scmp.eq.s32.totalorder %s11, 0
    %p93 = por %p91, %p92
    %p94 = scmp.ne.s32.totalorder %s86, %s88
    %p95 = scmp.eq.s32.totalorder %s16, 3
    %p96 = por %p94, %p95
    %p97 = scmp.ne.s32.totalorder %s88, %s89
    %p98 = scmp.eq.s32.totalorder %s16, 0
    %p99 = por %p97, %p98
    %p100 = scmp.ne.s32.totalorder %s88, %s89
    %p101 = scmp.eq.s32.totalorder %s17, 3
    %p102 = por %p100, %p101
    %p104 = scmp.ne.s32.totalorder %s89, %s103
    %p105 = scmp.eq.s32.totalorder %s17, 0
    %p106 = por %p104, %p105
    %s107 = ssub.s32 %s18, %s30
    %p108 = scmp.eq.s32.totalorder %s107, 0
    %s110 = sadd.s32 %s109, 1
    %s111 = scalar_select %p108, %s109, %s110
    %p114 = pneg %p108
    %p115 = scmp.eq.s32.totalorder %s11, 3
    %p116 = por %p114, %p115
    %p117 = scmp.ne.s32.totalorder %s109, %s112
    %p118 = scmp.eq.s32.totalorder %s11, 0
    %p119 = por %p117, %p118
    %p120 = scmp.ne.s32.totalorder %s109, %s112
    %p121 = scmp.eq.s32.totalorder %s16, 3
    %p122 = por %p120, %p121
    %p123 = scmp.ne.s32.totalorder %s112, %s113
    %p124 = scmp.eq.s32.totalorder %s16, 0
    %p125 = por %p123, %p124
    %p126 = scmp.ne.s32.totalorder %s112, %s113
    %p127 = scmp.eq.s32.totalorder %s17, 3
    %p128 = por %p126, %p127
    %p130 = scmp.ne.s32.totalorder %s113, %s129
    %p131 = scmp.eq.s32.totalorder %s17, 0
    %p132 = por %p130, %p131
    %s133 = ssub.s32 %s18, %s30
    %p134 = scmp.eq.s32.totalorder %s133, 0
    %s136 = sadd.s32 %s135, 1
    %s137 = scalar_select %p134, %s135, %s136
    %p140 = pneg %p134
    %p141 = scmp.eq.s32.totalorder %s11, 3
    %p142 = por %p140, %p141
    %p143 = scmp.ne.s32.totalorder %s135, %s138
    %p144 = scmp.eq.s32.totalorder %s11, 0
    %p145 = por %p143, %p144
    %p146 = scmp.ne.s32.totalorder %s135, %s138
    %p147 = scmp.eq.s32.totalorder %s16, 3
    %p148 = por %p146, %p147
    %p149 = scmp.ne.s32.totalorder %s138, %s139
    %p150 = scmp.eq.s32.totalorder %s16, 0
    %p151 = por %p149, %p150
    %p152 = scmp.ne.s32.totalorder %s138, %s139
    %p153 = scmp.eq.s32.totalorder %s17, 3
    %p154 = por %p152, %p153
    %p156 = scmp.ne.s32.totalorder %s139, %s155
    %p157 = scmp.eq.s32.totalorder %s17, 0
    %p158 = por %p156, %p157
    %p159 = scmp.le.s32.totalorder 1, %s11
    %p160 = scmp.lt.s32.totalorder %s11, 5
    %p161 = pnand %p159, %p160
    %p162 = pneg %p161
    // Predicated region
    $region9: #{receiver_forward.2} parent=5 // pred_check
      _
    $region10: #{receiver_forward.2} parent=5 // pred_check_branch
      %164 = sbr.rel (%p161) target = $region12
    $region11: #{receiver_forward.2} parent=5 // pred_region
      %s165 = ssub.s32 %s11, 1
      // Predicated region
      $region13: #{receiver_forward.2} parent=11 // pred_check
        %p166 = pneg %p78
      $region14: #{receiver_forward.2} parent=11 // pred_check_branch
        %168 = sbr.rel (%p166) target = $region16
      $region15: #{receiver_forward.2} parent=11 // pred_region
        _
      $region16: #{receiver_forward.2} parent=11 // pred_fallthru
        _
      // Predicated region
      $region17: #{receiver_forward.2} parent=11 // pred_check
        %p169 = pneg %p99
      $region18: #{receiver_forward.2} parent=11 // pred_check_branch
        %171 = sbr.rel (%p169) target = $region20
      $region19: #{receiver_forward.2} parent=11 // pred_region
        _
      $region20: #{receiver_forward.2} parent=11 // pred_fallthru
        _
    $region12: #{receiver_forward.2} parent=5 // pred_fallthru
      _
    %p172 = scmp.lt.s32.totalorder %s11, 4
    // Predicated region
    $region21: #{receiver_forward.2} parent=5 // pred_check
      %p173 = pneg %p172
    $region22: #{receiver_forward.2} parent=5 // pred_check_branch
      %175 = sbr.rel (%p173) target = $region24
    $region23: #{receiver_forward.2} parent=5 // pred_region
      // Predicated region
      $region25: #{receiver_forward.2} parent=23 // pred_check
        %p176 = pneg %p51
      $region26: #{receiver_forward.2} parent=23 // pred_check_branch
        %178 = sbr.rel (%p176) target = $region28
      $region27: #{receiver_forward.2} parent=23 // pred_region
        %s179 = smul.u32 %s18, 2
        %s180 = sadd.s32 %s179, %s19
        %p181 = scmp.lt.s32.totalorder %s180, 2
        %s182 = scalar_select %p181, %s180, 2
        %s183 = smul.u32 16, %s182
        %s184 = ssub.s32 38, %s183
        %p185 = scmp.lt.s32.totalorder %s184, 16
        %s186 = scalar_select %p185, %s184, 16
        %s187 = smul.u32 128, %s186
        %p188 = scmp.lt.s32.totalorder %s183, 37
        %s189 = scalar_select %p188, %s183, 37
        %s190 = smul.addr %s189, 8
        %s191 = scalar_lea.vmem %s0, %s190
        %s192 = smul.u32 %s18, 2
        %s193 = sadd.s32 %s192, %s19
        %p194 = scmp.lt.s32.totalorder %s193, 2
        %s195 = scalar_select %p194, %s193, 2
        %s196 = smul.u32 16, %s195
        %s197 = ssub.s32 38, %s196
        %p198 = scmp.lt.s32.totalorder %s197, 16
        %s199 = scalar_select %p198, %s197, 16
        %s200 = smul.u32 128, %s199
      $region28: #{receiver_forward.2} parent=23 // pred_fallthru
        _
    $region24: #{receiver_forward.2} parent=5 // pred_fallthru
      _
    %p201 = scmp.le.s32.totalorder 1, %s11
    %p202 = scmp.lt.s32.totalorder %s11, 5
    %p203 = pnand %p201, %p202
    %p204 = pneg %p203
    // Predicated region
    $region29: #{receiver_forward.2} parent=5 // pred_check
      _
    $region30: #{receiver_forward.2} parent=5 // pred_check_branch
      %206 = sbr.rel (%p203) target = $region32
    $region31: #{receiver_forward.2} parent=5 // pred_region
      %s207 = ssub.s32 %s11, 1
      %s208 = smul.u32 %s20, 2
      %s209 = sadd.s32 %s208, %s21
      %p210 = scmp.lt.s32.totalorder %s209, 2
      %s211 = scalar_select %p210, %s209, 2
      %s212 = smul.u32 16, %s211
      %s213 = ssub.s32 38, %s212
      %p214 = scmp.lt.s32.totalorder %s213, 16
      %s215 = scalar_select %p214, %s213, 16
      %s216 = smul.u32 128, %s215
      %p217 = scmp.lt.s32.totalorder %s212, 37
      %s218 = scalar_select %p217, %s212, 37
      %s219 = smul.addr %s218, 8
      %s220 = scalar_lea.vmem %s0, %s219
      %p221 = pneg %p57
      %p222 = pneg %p54
      %p223 = pneg %p78
      %p224 = pneg %p75
      %p225 = pneg %p99
      %p226 = pneg %p96
      %p227 = pneg %p125
      %p228 = pneg %p122
      %p229 = scmp.lt.s32.totalorder %s20, 1
      %s230 = scalar_select %p229, %s20, 1
      %s231 = scalar_lea.vmem %s3, %s230
      %p232 = pneg %p151
      %p233 = pneg %p148
      %p234 = scmp.lt.s32.totalorder %s20, 1
      %s235 = scalar_select %p234, %s20, 1
      %s236 = smul.addr %s235, 4
      %s237 = smul.addr %s236, 8
      %s238 = scalar_lea.vmem %s4, %s237
      %s239 = smul.u32 %s20, 2
      %s240 = sadd.s32 %s239, %s21
      %p241 = scmp.lt.s32.totalorder %s240, 2
      %s242 = scalar_select %p241, %s240, 2
      %s243 = smul.u32 16, %s242
      %s244 = ssub.s32 38, %s243
      %p245 = scmp.lt.s32.totalorder %s244, 16
      %s246 = scalar_select %p245, %s244, 16
      %s247 = smul.u32 128, %s246
      %p248 = scmp.lt.s32.totalorder %s243, 37
      %s249 = scalar_select %p248, %s243, 37
      %s250 = smul.addr %s249, 8
      %s251 = scalar_lea.vmem %s0, %s250
      %s252 = smul.u32 %s20, 2
      %s253 = sadd.s32 %s252, %s21
      %p254 = scmp.lt.s32.totalorder %s253, 2
      %s255 = scalar_select %p254, %s253, 2
      %s256 = smul.u32 16, %s255
      %s257 = ssub.s32 38, %s256
      %p258 = scmp.lt.s32.totalorder %s257, 16
      %s259 = scalar_select %p258, %s257, 16
      %s260 = smul.u32 128, %s259
      %p261 = scmp.lt.s32.totalorder %s20, 1
      %s262 = scalar_select %p261, %s20, 1
      %s263 = scalar_lea.vmem %s3, %s262
      %p264 = scmp.lt.s32.totalorder %s20, 1
      %s265 = scalar_select %p264, %s20, 1
      %s266 = smul.addr %s265, 4
      %s267 = smul.addr %s266, 8
      %s268 = scalar_lea.vmem %s4, %s267
      %p269 = scmp.eq.s32.totalorder %s21, 0
      // Predicated region
      $region33: #{receiver_forward.2} parent=31 // pred_check
        %p270 = pneg %p269
      $region34: #{receiver_forward.2} parent=31 // pred_check_branch
        %272 = sbr.rel (%p270) target = $region36
      $region35: #{receiver_forward.2} parent=31 // pred_region
        %vm273 = vcmask 253952
        %274 = vst.msk [vmem:[%s263] sm:$0x1] %vm273, 0.0
        %vm275 = vcmask 261120
        %276 = vst.msk [vmem:[%s268] sm:$0xff] %vm275, 0.0
        %277 = vst.msk [vmem:[%s268 + $0x8] sm:$0xff] %vm275, 0.0
        %278 = vst.msk [vmem:[%s268 + $0x10] sm:$0xff] %vm275, 0.0
        %279 = vst.msk [vmem:[%s268 + $0x18] sm:$0xff] %vm275, 0.0
      $region36: #{receiver_forward.2} parent=31 // pred_fallthru
        _
      %v280 = vld [vmem:[%s251] sm:$0xff]
      %v281 = vld [vmem:[%s251 + $0x8] sm:$0xff]
      %v282 = vld [vmem:[%s251 + $0x10] sm:$0xff]
      %v283 = vld [vmem:[%s251 + $0x18] sm:$0xff]
      %v284 = vld [vmem:[%s251 + $0x20] sm:$0xff]
      %v285 = vld [vmem:[%s251 + $0x28] sm:$0xff]
      %v286 = vld [vmem:[%s251 + $0x30] sm:$0xff]
      %v287 = vld [vmem:[%s251 + $0x38] sm:$0xff]
      %v288 = vld [vmem:[%s251 + $0x40] sm:$0xff]
      %v289 = vld [vmem:[%s251 + $0x48] sm:$0xff]
      %v290 = vld [vmem:[%s251 + $0x50] sm:$0xff]
      %v291 = vld [vmem:[%s251 + $0x58] sm:$0xff]
      %v292 = vld [vmem:[%s251 + $0x60] sm:$0xff]
      %v293 = vld [vmem:[%s251 + $0x68] sm:$0xff]
      %v294 = vld [vmem:[%s251 + $0x70] sm:$0xff]
      %v295 = vld [vmem:[%s251 + $0x78] sm:$0xff]
      %v296 = vld [vmem:[%s1] sm:$0xff]
      %v297 = vld [vmem:[%s1 + $0x8] sm:$0xff]
      %v298 = vld [vmem:[%s2] sm:$0x1]
      %v300 = vlaneseq
      %v301 = vshrl.u32 %v300, 7
      %v302 = vsub.s32 0, %v301
      %v303 = vrot.slane %v298, %v302
      %vm305 = vcmask 130048
      %v307 = vsel %vm305, %v280, 0
      %v310 = vsel %vm305, %v281, 0
      %v313 = vsel %vm305, %v282, 0
      %v316 = vsel %vm305, %v283, 0
      %v319 = vsel %vm305, %v284, 0
      %v322 = vsel %vm305, %v285, 0
      %v325 = vsel %vm305, %v286, 0
      %v328 = vsel %vm305, %v287, 0
      %v331 = vsel %vm305, %v288, 0
      %v334 = vsel %vm305, %v289, 0
      %v337 = vsel %vm305, %v290, 0
      %v340 = vsel %vm305, %v291, 0
      %v343 = vsel %vm305, %v292, 0
      %v346 = vsel %vm305, %v293, 0
      %v349 = vsel %vm305, %v294, 0
      %v352 = vsel %vm305, %v295, 0
      %354 = vmatprep.subr.mxu0 0.0
      %355 = vmatpush1.msra.mxu0 %v296
      %356 = vmatprep.subr.mxu0 0.0
      %357 = vmatpush1.msra.mxu0 %v297
      %358 = vmatprep.subr.mxu0 0.0
      %359 = vmatpush1.msra.mxu0 0.0
      %360 = vmatprep.subr.mxu0 0.0
      %361 = vmatpush1.msra.mxu0 0.0
      %362 = vmatprep.subr.mxu0 0.0
      %363 = vmatpush1.msra.mxu0 0.0
      %364 = vmatprep.subr.mxu0 0.0
      %365 = vmatpush1.msra.mxu0 0.0
      %366 = vmatprep.subr.mxu0 0.0
      %367 = vmatpush1.msra.mxu0 0.0
      %368 = vmatprep.subr.mxu0 0.0
      %369 = vmatpush1.msra.mxu0 0.0
      %370 = vmatprep.subr.mxu0 0.0
      %371 = vmatpush1.msra.mxu0 0.0
      %372 = vmatprep.subr.mxu0 0.0
      %373 = vmatpush1.msra.mxu0 0.0
      %374 = vmatprep.subr.mxu0 0.0
      %375 = vmatpush1.msra.mxu0 0.0
      %376 = vmatprep.subr.mxu0 0.0
      %377 = vmatpush1.msra.mxu0 0.0
      %378 = vmatprep.subr.mxu0 0.0
      %379 = vmatpush1.msra.mxu0 0.0
      %380 = vmatprep.subr.mxu0 0.0
      %381 = vmatpush1.msra.mxu0 0.0
      %382 = vmatprep.subr.mxu0 0.0
      %383 = vmatpush1.msra.mxu0 0.0
      %384 = vmatprep.subr.mxu0 0.0
      %385 = vmatpush1.msra.mxu0 0.0
      %386 = vmatprep.subr.mxu0 0.0
      %387 = vmatpush1.msra.mxu0 0.0
      %388 = vmatprep.subr.mxu0 0.0
      %389 = vmatpush1.msra.mxu0 0.0
      %390 = vmatprep.subr.mxu0 0.0
      %391 = vmatpush1.msra.mxu0 0.0
      %392 = vmatprep.subr.mxu0 0.0
      %393 = vmatpush1.msra.mxu0 0.0
      %394 = vmatprep.subr.mxu0 0.0
      %395 = vmatpush1.msra.mxu0 0.0
      %396 = vmatprep.subr.mxu0 0.0
      %397 = vmatpush1.msra.mxu0 0.0
      %398 = vmatprep.subr.mxu0 0.0
      %399 = vmatpush1.msra.mxu0 0.0
      %400 = vmatprep.subr.mxu0 0.0
      %401 = vmatpush1.msra.mxu0 0.0
      %402 = vmatprep.subr.mxu0 0.0
      %403 = vmatpush1.msra.mxu0 0.0
      %404 = vmatprep.subr.mxu0 0.0
      %405 = vmatpush1.msra.mxu0 0.0
      %406 = vmatprep.subr.mxu0 0.0
      %407 = vmatpush1.msra.mxu0 0.0
      %408 = vmatprep.subr.mxu0 0.0
      %409 = vmatpush1.msra.mxu0 0.0
      %410 = vmatprep.subr.mxu0 0.0
      %411 = vmatpush1.msra.mxu0 0.0
      %412 = vmatprep.subr.mxu0 0.0
      %413 = vmatpush1.msra.mxu0 0.0
      %414 = vmatprep.subr.mxu0 0.0
      %415 = vmatpush1.msra.mxu0 0.0
      %416 = vmatprep.subr.mxu0 0.0
      %417 = vmatpush1.msra.mxu0 0.0
      %418 = vmatprep.mubr.f32.mxu0 0.0
      %419 = vmatmul.mubr.f32.gmra.mrb[0].mxu0 %v307
      %v420 = vpop.f32.mrb[0].mxu0
      %v421 = vadd.f32 %v303, %v420
      %v422 = vpop.f32.mrb[0].mxu0
      %423 = vmatprep.mubr.f32.mxu0 0.0
      %424 = vmatmul.mubr.f32.gmra.mrb[0].mxu0 %v310
      %v425 = vpop.f32.mrb[0].mxu0
      %v426 = vadd.f32 %v303, %v425
      %v427 = vpop.f32.mrb[0].mxu0
      %428 = vmatprep.mubr.f32.mxu0 0.0
      %429 = vmatmul.mubr.f32.gmra.mrb[0].mxu0 %v313
      %v430 = vpop.f32.mrb[0].mxu0
      %v431 = vadd.f32 %v303, %v430
      %v432 = vpop.f32.mrb[0].mxu0
      %433 = vmatprep.mubr.f32.mxu0 0.0
      %434 = vmatmul.mubr.f32.gmra.mrb[0].mxu0 %v316
      %v435 = vpop.f32.mrb[0].mxu0
      %v436 = vadd.f32 %v303, %v435
      %v437 = vpop.f32.mrb[0].mxu0
      %438 = vmatprep.mubr.f32.mxu0 0.0
      %439 = vmatmul.mubr.f32.gmra.mrb[0].mxu0 %v319
      %v440 = vpop.f32.mrb[0].mxu0
      %v441 = vadd.f32 %v303, %v440
      %v442 = vpop.f32.mrb[0].mxu0
      %443 = vmatprep.mubr.f32.mxu0 0.0
      %444 = vmatmul.mubr.f32.gmra.mrb[0].mxu0 %v322
      %v445 = vpop.f32.mrb[0].mxu0
      %v446 = vadd.f32 %v303, %v445
      %v447 = vpop.f32.mrb[0].mxu0
      %448 = vmatprep.mubr.f32.mxu0 0.0
      %449 = vmatmul.mubr.f32.gmra.mrb[0].mxu0 %v325
      %v450 = vpop.f32.mrb[0].mxu0
      %v451 = vadd.f32 %v303, %v450
      %v452 = vpop.f32.mrb[0].mxu0
      %453 = vmatprep.mubr.f32.mxu0 0.0
      %454 = vmatmul.mubr.f32.gmra.mrb[0].mxu0 %v328
      %v455 = vpop.f32.mrb[0].mxu0
      %v456 = vadd.f32 %v303, %v455
      %v457 = vpop.f32.mrb[0].mxu0
      %458 = vmatprep.mubr.f32.mxu0 0.0
      %459 = vmatmul.mubr.f32.gmra.mrb[0].mxu0 %v331
      %v460 = vpop.f32.mrb[0].mxu0
      %v461 = vadd.f32 %v303, %v460
      %v462 = vpop.f32.mrb[0].mxu0
      %463 = vmatprep.mubr.f32.mxu0 0.0
      %464 = vmatmul.mubr.f32.gmra.mrb[0].mxu0 %v334
      %v465 = vpop.f32.mrb[0].mxu0
      %v466 = vadd.f32 %v303, %v465
      %v467 = vpop.f32.mrb[0].mxu0
      %468 = vmatprep.mubr.f32.mxu0 0.0
      %469 = vmatmul.mubr.f32.gmra.mrb[0].mxu0 %v337
      %v470 = vpop.f32.mrb[0].mxu0
      %v471 = vadd.f32 %v303, %v470
      %v472 = vpop.f32.mrb[0].mxu0
      %473 = vmatprep.mubr.f32.mxu0 0.0
      %474 = vmatmul.mubr.f32.gmra.mrb[0].mxu0 %v340
      %v475 = vpop.f32.mrb[0].mxu0
      %v476 = vadd.f32 %v303, %v475
      %v477 = vpop.f32.mrb[0].mxu0
      %478 = vmatprep.mubr.f32.mxu0 0.0
      %479 = vmatmul.mubr.f32.gmra.mrb[0].mxu0 %v343
      %v480 = vpop.f32.mrb[0].mxu0
      %v481 = vadd.f32 %v303, %v480
      %v482 = vpop.f32.mrb[0].mxu0
      %483 = vmatprep.mubr.f32.mxu0 0.0
      %484 = vmatmul.mubr.f32.gmra.mrb[0].mxu0 %v346
      %v485 = vpop.f32.mrb[0].mxu0
      %v486 = vadd.f32 %v303, %v485
      %v487 = vpop.f32.mrb[0].mxu0
      %488 = vmatprep.mubr.f32.mxu0 0.0
      %489 = vmatmul.mubr.f32.gmra.mrb[0].mxu0 %v349
      %v490 = vpop.f32.mrb[0].mxu0
      %v491 = vadd.f32 %v303, %v490
      %v492 = vpop.f32.mrb[0].mxu0
      %493 = vmatprep.mubr.f32.mxu0 0.0
      %494 = vmatmul.mubr.f32.gmra.mrb[0].mxu0 %v352
      %v495 = vpop.f32.mrb[0].mxu0
      %v496 = vadd.f32 %v303, %v495
      %v497 = vpop.f32.mrb[0].mxu0
      %498 = vdwg.mxu0
      %v499 = vmax.f32 %v421, 0.0
      %v500 = vmax.f32 %v426, 0.0
      %v501 = vmax.f32 %v431, 0.0
      %v502 = vmax.f32 %v436, 0.0
      %v503 = vmax.f32 %v441, 0.0
      %v504 = vmax.f32 %v446, 0.0
      %v505 = vmax.f32 %v451, 0.0
      %v506 = vmax.f32 %v456, 0.0
      %v507 = vmax.f32 %v461, 0.0
      %v508 = vmax.f32 %v466, 0.0
      %v509 = vmax.f32 %v471, 0.0
      %v510 = vmax.f32 %v476, 0.0
      %v511 = vmax.f32 %v481, 0.0
      %v512 = vmax.f32 %v486, 0.0
      %v513 = vmax.f32 %v491, 0.0
      %v514 = vmax.f32 %v496, 0.0
      %s515 = smul.u32 %s20, 2
      %s516 = sadd.s32 %s515, %s21
      %v517 = vlaneseq
      %v518 = vshrl.u32 %v517, 7
      %v519 = vadd.s32 %v518, 8
      %v520 = vadd.s32 %v518, 16
      %v521 = vadd.s32 %v518, 24
      %v522 = vadd.s32 %v518, 32
      %v523 = vadd.s32 %v518, 40
      %v524 = vadd.s32 %v518, 48
      %v525 = vadd.s32 %v518, 56
      %v526 = vadd.s32 %v518, 64
      %v527 = vadd.s32 %v518, 72
      %v528 = vadd.s32 %v518, 80
      %v529 = vadd.s32 %v518, 88
      %v530 = vadd.s32 %v518, 96
      %v531 = vadd.s32 %v518, 104
      %v532 = vadd.s32 %v518, 112
      %v533 = vadd.s32 %v518, 120
      %s534 = smul.u32 %s516, 128
      %v535 = vstv %s534
      %v536 = vadd.s32 %v518, %v535
      %v537 = vadd.s32 %v519, %v535
      %v538 = vadd.s32 %v520, %v535
      %v539 = vadd.s32 %v521, %v535
      %v540 = vadd.s32 %v522, %v535
      %v541 = vadd.s32 %v523, %v535
      %v542 = vadd.s32 %v524, %v535
      %v543 = vadd.s32 %v525, %v535
      %v544 = vadd.s32 %v526, %v535
      %v545 = vadd.s32 %v527, %v535
      %v546 = vadd.s32 %v528, %v535
      %v547 = vadd.s32 %v529, %v535
      %v548 = vadd.s32 %v530, %v535
      %v549 = vadd.s32 %v531, %v535
      %v550 = vadd.s32 %v532, %v535
      %v551 = vadd.s32 %v533, %v535
      %vm552 = vcmp.lt.s32.totalorder %v536, 300
      %vm553 = vcmp.lt.s32.totalorder %v537, 300
      %vm554 = vcmp.lt.s32.totalorder %v538, 300
      %vm555 = vcmp.lt.s32.totalorder %v539, 300
      %vm556 = vcmp.lt.s32.totalorder %v540, 300
      %vm557 = vcmp.lt.s32.totalorder %v541, 300
      %vm558 = vcmp.lt.s32.totalorder %v542, 300
      %vm559 = vcmp.lt.s32.totalorder %v543, 300
      %vm560 = vcmp.lt.s32.totalorder %v544, 300
      %vm561 = vcmp.lt.s32.totalorder %v545, 300
      %vm562 = vcmp.lt.s32.totalorder %v546, 300
      %vm563 = vcmp.lt.s32.totalorder %v547, 300
      %vm564 = vcmp.lt.s32.totalorder %v548, 300
      %vm565 = vcmp.lt.s32.totalorder %v549, 300
      %vm566 = vcmp.lt.s32.totalorder %v550, 300
      %vm567 = vcmp.lt.s32.totalorder %v551, 300
      %v568 = vsel %vm552, %v499, 0.0
      %v569 = vsel %vm553, %v500, 0.0
      %v570 = vsel %vm554, %v501, 0.0
      %v571 = vsel %vm555, %v502, 0.0
      %v572 = vsel %vm556, %v503, 0.0
      %v573 = vsel %vm557, %v504, 0.0
      %v574 = vsel %vm558, %v505, 0.0
      %v575 = vsel %vm559, %v506, 0.0
      %v576 = vsel %vm560, %v507, 0.0
      %v577 = vsel %vm561, %v508, 0.0
      %v578 = vsel %vm562, %v509, 0.0
      %v579 = vsel %vm563, %v510, 0.0
      %v580 = vsel %vm564, %v511, 0.0
      %v581 = vsel %vm565, %v512, 0.0
      %v582 = vsel %vm566, %v513, 0.0
      %v583 = vsel %vm567, %v514, 0.0
      %v584 = vld [vmem:[%s263] sm:$0x1]
      %vm585 = vcmask 261120
      %v586 = vsel %vm585, %v568, 0.0
      %v587 = vsel %vm585, %v569, 0.0
      %v588 = vadd.f32 %v586, %v587
      %v589 = vsel %vm585, %v570, 0.0
      %v590 = vadd.f32 %v588, %v589
      %v591 = vsel %vm585, %v571, 0.0
      %v592 = vadd.f32 %v590, %v591
      %v593 = vsel %vm585, %v572, 0.0
      %v594 = vadd.f32 %v592, %v593
      %v595 = vsel %vm585, %v573, 0.0
      %v596 = vadd.f32 %v594, %v595
      %v597 = vsel %vm585, %v574, 0.0
      %v598 = vadd.f32 %v596, %v597
      %v599 = vsel %vm585, %v575, 0.0
      %v600 = vadd.f32 %v598, %v599
      %v601 = vsel %vm585, %v576, 0.0
      %v602 = vadd.f32 %v600, %v601
      %v603 = vsel %vm585, %v577, 0.0
      %v604 = vadd.f32 %v602, %v603
      %v605 = vsel %vm585, %v578, 0.0
      %v606 = vadd.f32 %v604, %v605
      %v607 = vsel %vm585, %v579, 0.0
      %v608 = vadd.f32 %v606, %v607
      %v609 = vsel %vm585, %v580, 0.0
      %v610 = vadd.f32 %v608, %v609
      %v611 = vsel %vm585, %v581, 0.0
      %v612 = vadd.f32 %v610, %v611
      %v613 = vsel %vm585, %v582, 0.0
      %v614 = vadd.f32 %v612, %v613
      %v615 = vsel %vm585, %v583, 0.0
      %v616 = vadd.f32 %v614, %v615
      %v617 = vrot.slane %v616, 4
      %v618 = vadd.f32 %v616, %v617
      %v619 = vrot.slane %v618, 2
      %v620 = vadd.f32 %v618, %v619
      %v621 = vrot.slane %v620, 1
      %v622 = vadd.f32 %v620, %v621
      %v623 = vadd.f32 %v584, %v622
      %vm624 = vcmask 253952
      %625 = vst.msk [vmem:[%s263] sm:$0x1] %vm624, %v623
      %v626 = vld [vmem:[%s268] sm:$0xff]
      %v627 = vld [vmem:[%s268 + $0x8] sm:$0xff]
      %v628 = vld [vmem:[%s268 + $0x10] sm:$0xff]
      %v629 = vld [vmem:[%s268 + $0x18] sm:$0xff]
      %630 = vxpose.xlu0.b32.start [1/16] %v568, 128
      %631 = vxpose.xlu0.b32.cont [2/16] %v569, 128
      %632 = vxpose.xlu0.b32.cont [3/16] %v570, 128
      %633 = vxpose.xlu0.b32.cont [4/16] %v571, 128
      %634 = vxpose.xlu0.b32.cont [5/16] %v572, 128
      %635 = vxpose.xlu0.b32.cont [6/16] %v573, 128
      %636 = vxpose.xlu0.b32.cont [7/16] %v574, 128
      %637 = vxpose.xlu0.b32.cont [8/16] %v575, 128
      %638 = vxpose.xlu0.b32.cont [9/16] %v576, 128
      %639 = vxpose.xlu0.b32.cont [10/16] %v577, 128
      %640 = vxpose.xlu0.b32.cont [11/16] %v578, 128
      %641 = vxpose.xlu0.b32.cont [12/16] %v579, 128
      %642 = vxpose.xlu0.b32.cont [13/16] %v580, 128
      %643 = vxpose.xlu0.b32.cont [14/16] %v581, 128
      %644 = vxpose.xlu0.b32.cont [15/16] %v582, 128
      %645 = vxpose.xlu0.b32.end [16/16] %v583, 128
      %v646 = vpop.trf.xlu0
      %v647 = vpop.trf.xlu0
      %v648 = vpop.trf.xlu0
      %v649 = vpop.trf.xlu0
      %v650 = vpop.trf.xlu0
      %v651 = vpop.trf.xlu0
      %v652 = vpop.trf.xlu0
      %v653 = vpop.trf.xlu0
      %v654 = vpop.trf.xlu0
      %v655 = vpop.trf.xlu0
      %v656 = vpop.trf.xlu0
      %v657 = vpop.trf.xlu0
      %v658 = vpop.trf.xlu0
      %v659 = vpop.trf.xlu0
      %v660 = vpop.trf.xlu0
      %v661 = vpop.trf.xlu0
      %662 = vmatprep.subr.mxu0 0.0
      %663 = vmatpush1.msra.mxu0 %v568
      %664 = vmatprep.subr.mxu0 0.0
      %665 = vmatpush1.msra.mxu0 %v569
      %666 = vmatprep.subr.mxu0 0.0
      %667 = vmatpush1.msra.mxu0 %v570
      %668 = vmatprep.subr.mxu0 0.0
      %669 = vmatpush1.msra.mxu0 %v571
      %670 = vmatprep.subr.mxu0 0.0
      %671 = vmatpush1.msra.mxu0 %v572
      %672 = vmatprep.subr.mxu0 0.0
      %673 = vmatpush1.msra.mxu0 %v573
      %674 = vmatprep.subr.mxu0 0.0
      %675 = vmatpush1.msra.mxu0 %v574
      %676 = vmatprep.subr.mxu0 0.0
      %677 = vmatpush1.msra.mxu0 %v575
      %678 = vmatprep.subr.mxu0 0.0
      %679 = vmatpush1.msra.mxu0 %v576
      %680 = vmatprep.subr.mxu0 0.0
      %681 = vmatpush1.msra.mxu0 %v577
      %682 = vmatprep.subr.mxu0 0.0
      %683 = vmatpush1.msra.mxu0 %v578
      %684 = vmatprep.subr.mxu0 0.0
      %685 = vmatpush1.msra.mxu0 %v579
      %686 = vmatprep.subr.mxu0 0.0
      %687 = vmatpush1.msra.mxu0 %v580
      %688 = vmatprep.subr.mxu0 0.0
      %689 = vmatpush1.msra.mxu0 %v581
      %690 = vmatprep.subr.mxu0 0.0
      %691 = vmatpush1.msra.mxu0 %v582
      %692 = vmatprep.subr.mxu0 0.0
      %693 = vmatpush1.msra.mxu0 %v583
      %694 = vmatprep.subr.mxu0 0.0
      %695 = vmatpush1.msra.mxu0 0.0
      %696 = vmatprep.subr.mxu0 0.0
      %697 = vmatpush1.msra.mxu0 0.0
      %698 = vmatprep.subr.mxu0 0.0
      %699 = vmatpush1.msra.mxu0 0.0
      %700 = vmatprep.subr.mxu0 0.0
      %701 = vmatpush1.msra.mxu0 0.0
      %702 = vmatprep.subr.mxu0 0.0
      %703 = vmatpush1.msra.mxu0 0.0
      %704 = vmatprep.subr.mxu0 0.0
      %705 = vmatpush1.msra.mxu0 0.0
      %706 = vmatprep.subr.mxu0 0.0
      %707 = vmatpush1.msra.mxu0 0.0
      %708 = vmatprep.subr.mxu0 0.0
      %709 = vmatpush1.msra.mxu0 0.0
      %710 = vmatprep.subr.mxu0 0.0
      %711 = vmatpush1.msra.mxu0 0.0
      %712 = vmatprep.subr.mxu0 0.0
      %713 = vmatpush1.msra.mxu0 0.0
      %714 = vmatprep.subr.mxu0 0.0
      %715 = vmatpush1.msra.mxu0 0.0
      %716 = vmatprep.subr.mxu0 0.0
      %717 = vmatpush1.msra.mxu0 0.0
      %718 = vmatprep.subr.mxu0 0.0
      %719 = vmatpush1.msra.mxu0 0.0
      %720 = vmatprep.subr.mxu0 0.0
      %721 = vmatpush1.msra.mxu0 0.0
      %722 = vmatprep.subr.mxu0 0.0
      %723 = vmatpush1.msra.mxu0 0.0
      %724 = vmatprep.subr.mxu0 0.0
      %725 = vmatpush1.msra.mxu0 0.0
      %726 = vmatprep.mubr.f32.mxu0 0.0
      %727 = vmatmul.mubr.f32.gmra.mrb[0].mxu0 %v646
      %v728 = vpop.f32.mrb[0].mxu0
      %v729 = vadd.f32 0.0, %v728
      %v730 = vpop.f32.mrb[0].mxu0
      %731 = vmatprep.mubr.f32.mxu0 0.0
      %732 = vmatmul.mubr.f32.gmra.mrb[0].mxu0 %v647
      %v733 = vpop.f32.mrb[0].mxu0
      %v734 = vadd.f32 0.0, %v733
      %v735 = vpop.f32.mrb[0].mxu0
      %736 = vmatprep.mubr.f32.mxu0 0.0
      %737 = vmatmul.mubr.f32.gmra.mrb[0].mxu0 %v648
      %v738 = vpop.f32.mrb[0].mxu0
      %v739 = vadd.f32 0.0, %v738
      %v740 = vpop.f32.mrb[0].mxu0
      %741 = vmatprep.mubr.f32.mxu0 0.0
      %742 = vmatmul.mubr.f32.gmra.mrb[0].mxu0 %v649
      %v743 = vpop.f32.mrb[0].mxu0
      %v744 = vadd.f32 0.0, %v743
      %v745 = vpop.f32.mrb[0].mxu0
      %746 = vdwg.mxu0
      %v747 = vadd.f32 %v626, %v729
      %v748 = vadd.f32 %v627, %v734
      %v749 = vadd.f32 %v628, %v739
      %v750 = vadd.f32 %v629, %v744
      %751 = vst.msk [vmem:[%s268] sm:$0xff] %vm585, %v747
      %752 = vst.msk [vmem:[%s268 + $0x8] sm:$0xff] %vm585, %v748
      %753 = vst.msk [vmem:[%s268 + $0x10] sm:$0xff] %vm585, %v749
      %754 = vst.msk [vmem:[%s268 + $0x18] sm:$0xff] %vm585, %v750
      %p755 = scmp.lt.s32.totalorder %s20, 1
      %s756 = scalar_select %p755, %s20, 1
      %s757 = scalar_lea.vmem %s3, %s756
      %p758 = scmp.lt.s32.totalorder %s20, 1
      %s759 = scalar_select %p758, %s20, 1
      %s760 = smul.addr %s759, 4
      %s761 = smul.addr %s760, 8
      %s762 = scalar_lea.vmem %s4, %s761
      // Predicated region
      $region37: #{receiver_forward.2} parent=31 // pred_check
        %p763 = pneg %p122
      $region38: #{receiver_forward.2} parent=31 // pred_check_branch
        %765 = sbr.rel (%p763) target = $region40
      $region39: #{receiver_forward.2} parent=31 // pred_region
        _
      $region40: #{receiver_forward.2} parent=31 // pred_fallthru
        _
      // Predicated region
      $region41: #{receiver_forward.2} parent=31 // pred_check
        %p766 = pneg %p148
      $region42: #{receiver_forward.2} parent=31 // pred_check_branch
        %768 = sbr.rel (%p766) target = $region44
      $region43: #{receiver_forward.2} parent=31 // pred_region
        _
      $region44: #{receiver_forward.2} parent=31 // pred_fallthru
        _
    $region32: #{receiver_forward.2} parent=5 // pred_fallthru
      _
    %p769 = scmp.le.s32.totalorder 2, %s11
    // Predicated region
    $region45: #{receiver_forward.2} parent=5 // pred_check
      %p770 = pneg %p769
    $region46: #{receiver_forward.2} parent=5 // pred_check_branch
      %772 = sbr.rel (%p770) target = $region48
    $region47: #{receiver_forward.2} parent=5 // pred_region
      %s773 = ssub.s32 %s11, 2
      // Predicated region
      $region49: #{receiver_forward.2} parent=47 // pred_check
        %p774 = pneg %p128
      $region50: #{receiver_forward.2} parent=47 // pred_check_branch
        %776 = sbr.rel (%p774) target = $region52
      $region51: #{receiver_forward.2} parent=47 // pred_region
        %p777 = scmp.lt.s32.totalorder %s22, 1
        %s778 = scalar_select %p777, %s22, 1
        %s779 = scalar_lea.vmem %s3, %s778
      $region52: #{receiver_forward.2} parent=47 // pred_fallthru
        _
      // Predicated region
      $region53: #{receiver_forward.2} parent=47 // pred_check
        %p780 = pneg %p154
      $region54: #{receiver_forward.2} parent=47 // pred_check_branch
        %782 = sbr.rel (%p780) target = $region56
      $region55: #{receiver_forward.2} parent=47 // pred_region
        %p783 = scmp.lt.s32.totalorder %s22, 1
        %s784 = scalar_select %p783, %s22, 1
        %s785 = smul.addr %s784, 4
        %s786 = smul.addr %s785, 8
        %s787 = scalar_lea.vmem %s4, %s786
      $region56: #{receiver_forward.2} parent=47 // pred_fallthru
        _
    $region48: #{receiver_forward.2} parent=5 // pred_fallthru
      _
  $region6: #{receiver_forward.2} parent=0 // loop_footer
    %s15 = sadd.s32 1, %s11
  $region7: #{receiver_forward.2} parent=0 // loop_footer_branch
    %10 = sbr.rel target = $region3
  $region8: #{receiver_forward.2} parent=0 // loop_exit
    _

// kernel: receiver_forward.3
$region0: #{receiver_forward.3}
  #allocation0 [shape = 'u32[]', space=smem, size = 0x4, offset = 0x4, fixed_abs, tag = 'smem constant byte address 0x4 - core index']
  #allocation1 [shape = 'u32[144,128]{1,0:T(1,128)}', space=vmem, size = 0x12000, scoped, tag = 'internal scratch']
  %s0 = inlined_call_operand.vmem [shape: f32[300,16], index: 0, kind: input, shape index: {}]
  %s1 = inlined_call_operand.vmem [shape: f32[16,32], index: 1, kind: input, shape index: {}]
  %s2 = inlined_call_operand.vmem [shape: f32[1,32], index: 2, kind: input, shape index: {}]
  %s3 = inlined_call_operand.vmem [shape: f32[32,8], index: 3, kind: input, shape index: {}]
  %s4 = inlined_call_operand.vmem [shape: f32[1,8], index: 4, kind: input, shape index: {}]
  %s5 = inlined_call_operand.vmem [shape: f32[300,8], index: 5, kind: output, shape index: {}]
  %s6 = sld [smem:[#allocation0]]
  $region101: #{receiver_forward.3} parent=0
    _
  %s8 = ssub.s32 1, %s6
  %s9 = scalar_select 0, %s8, %s6
  $region1: #{receiver_forward.3} parent=0
    #allocation2 [shape = 'u8[131072]{0}', space=vmem, size = 0x20000, scoped, tag = 'output window, operand 0']
    loop: start=0, step=1, limit=5
    $region2: #{receiver_forward.3} parent=1 // loop_pre_header
      _
    $region3: #{receiver_forward.3} parent=1 // loop_header
      %s11 = sphi 0, %s15
      %p12 = scmp.ge.s32.totalorder %s11, 5
      %s21 = sphi 0, %s23
      %s24 = sphi 0, %s21
      %s25 = sphi 0, %s24
      %s41 = sphi 0, %s25
      %s45 = sphi 0, %s45
      %s47 = sphi 0, %s45
      %s48 = sphi 0, %s47
      %s62 = sphi 0, %s48
      %s66 = sphi 0, %s66
      %s68 = sphi 0, %s66
      %s69 = sphi 0, %s68
      %s83 = sphi 0, %s69
      %s87 = sphi 0, %s87
      %s89 = sphi 0, %s87
      %s90 = sphi 0, %s89
      %s104 = sphi 0, %s90
      %s108 = sphi 0, %s108
      %s110 = sphi 0, %s108
      %s111 = sphi 0, %s110
      %s125 = sphi 0, %s111
      %s131 = sphi 0, %s133
      %s134 = sphi 0, %s131
      %s135 = sphi 0, %s134
      %s151 = sphi 0, %s135
    $region4: #{receiver_forward.3} parent=1 // loop_header_branch
      %14 = sbr.rel (%p12) target = $region8
    $region5: #{receiver_forward.3} parent=1 // loop_body
      %s16 = ssub.s32 %s11, 1
      %s17 = ssub.s32 %s11, 2
      %s18 = sadd.s32 %s11, 1
      %s19 = ssub.s32 %s11, %s18
      %p20 = scmp.eq.s32.totalorder %s19, 0
      %s22 = sadd.s32 %s21, 1
      %s23 = scalar_select %p20, %s21, %s22
      %p26 = pneg %p20
      %p27 = scmp.eq.s32.totalorder %s11, 2
      %p28 = por %p26, %p27
      %p29 = scmp.ne.s32.totalorder %s21, %s24
      %p30 = scmp.eq.s32.totalorder %s11, 0
      %p31 = por %p29, %p30
      %p32 = scmp.ne.s32.totalorder %s21, %s24
      %p33 = scmp.eq.s32.totalorder %s16, 2
      %p34 = por %p32, %p33
      %p35 = scmp.ne.s32.totalorder %s24, %s25
      %p36 = scmp.eq.s32.totalorder %s16, 0
      %p37 = por %p35, %p36
      %p38 = scmp.ne.s32.totalorder %s24, %s25
      %p39 = scmp.eq.s32.totalorder %s17, 2
      %p40 = por %p38, %p39
      %p42 = scmp.ne.s32.totalorder %s25, %s41
      %p43 = scmp.eq.s32.totalorder %s17, 0
      %p44 = por %p42, %p43
      %s46 = sadd.s32 %s45, 1
      %p49 = scmp.eq.s32.totalorder %s11, 2
      %p50 = scmp.ne.s32.totalorder %s45, %s47
      %p51 = scmp.eq.s32.totalorder %s11, 0
      %p52 = por %p50, %p51
      %p53 = scmp.ne.s32.totalorder %s45, %s47
      %p54 = scmp.eq.s32.totalorder %s16, 2
      %p55 = por %p53, %p54
      %p56 = scmp.ne.s32.totalorder %s47, %s48
      %p57 = scmp.eq.s32.totalorder %s16, 0
      %p58 = por %p56, %p57
      %p59 = scmp.ne.s32.totalorder %s47, %s48
      %p60 = scmp.eq.s32.totalorder %s17, 2
      %p61 = por %p59, %p60
      %p63 = scmp.ne.s32.totalorder %s48, %s62
      %p64 = scmp.eq.s32.totalorder %s17, 0
      %p65 = por %p63, %p64
      %s67 = sadd.s32 %s66, 1
      %p70 = scmp.eq.s32.totalorder %s11, 2
      %p71 = scmp.ne.s32.totalorder %s66, %s68
      %p72 = scmp.eq.s32.totalorder %s11, 0
      %p73 = por %p71, %p72
      %p74 = scmp.ne.s32.totalorder %s66, %s68
      %p75 = scmp.eq.s32.totalorder %s16, 2
      %p76 = por %p74, %p75
      %p77 = scmp.ne.s32.totalorder %s68, %s69
      %p78 = scmp.eq.s32.totalorder %s16, 0
      %p79 = por %p77, %p78
      %p80 = scmp.ne.s32.totalorder %s68, %s69
      %p81 = scmp.eq.s32.totalorder %s17, 2
      %p82 = por %p80, %p81
      %p84 = scmp.ne.s32.totalorder %s69, %s83
      %p85 = scmp.eq.s32.totalorder %s17, 0
      %p86 = por %p84, %p85
      %s88 = sadd.s32 %s87, 1
      %p91 = scmp.eq.s32.totalorder %s11, 2
      %p92 = scmp.ne.s32.totalorder %s87, %s89
      %p93 = scmp.eq.s32.totalorder %s11, 0
      %p94 = por %p92, %p93
      %p95 = scmp.ne.s32.totalorder %s87, %s89
      %p96 = scmp.eq.s32.totalorder %s16, 2
      %p97 = por %p95, %p96
      %p98 = scmp.ne.s32.totalorder %s89, %s90
      %p99 = scmp.eq.s32.totalorder %s16, 0
      %p100 = por %p98, %p99
      %p101 = scmp.ne.s32.totalorder %s89, %s90
      %p102 = scmp.eq.s32.totalorder %s17, 2
      %p103 = por %p101, %p102
      %p105 = scmp.ne.s32.totalorder %s90, %s104
      %p106 = scmp.eq.s32.totalorder %s17, 0
      %p107 = por %p105, %p106
      %s109 = sadd.s32 %s108, 1
      %p112 = scmp.eq.s32.totalorder %s11, 2
      %p113 = scmp.ne.s32.totalorder %s108, %s110
      %p114 = scmp.eq.s32.totalorder %s11, 0
      %p115 = por %p113, %p114
      %p116 = scmp.ne.s32.totalorder %s108, %s110
      %p117 = scmp.eq.s32.totalorder %s16, 2
      %p118 = por %p116, %p117
      %p119 = scmp.ne.s32.totalorder %s110, %s111
      %p120 = scmp.eq.s32.totalorder %s16, 0
      %p121 = por %p119, %p120
      %p122 = scmp.ne.s32.totalorder %s110, %s111
      %p123 = scmp.eq.s32.totalorder %s17, 2
      %p124 = por %p122, %p123
      %p126 = scmp.ne.s32.totalorder %s111, %s125
      %p127 = scmp.eq.s32.totalorder %s17, 0
      %p128 = por %p126, %p127
      %s129 = ssub.s32 %s11, %s18
      %p130 = scmp.eq.s32.totalorder %s129, 0
      %s132 = sadd.s32 %s131, 1
      %s133 = scalar_select %p130, %s131, %s132
      %p136 = pneg %p130
      %p137 = scmp.eq.s32.totalorder %s11, 2
      %p138 = por %p136, %p137
      %p139 = scmp.ne.s32.totalorder %s131, %s134
      %p140 = scmp.eq.s32.totalorder %s11, 0
      %p141 = por %p139, %p140
      %p142 = scmp.ne.s32.totalorder %s131, %s134
      %p143 = scmp.eq.s32.totalorder %s16, 2
      %p144 = por %p142, %p143
      %p145 = scmp.ne.s32.totalorder %s134, %s135
      %p146 = scmp.eq.s32.totalorder %s16, 0
      %p147 = por %p145, %p146
      %p148 = scmp.ne.s32.totalorder %s134, %s135
      %p149 = scmp.eq.s32.totalorder %s17, 2
      %p150 = por %p148, %p149
      %p152 = scmp.ne.s32.totalorder %s135, %s151
      %p153 = scmp.eq.s32.totalorder %s17, 0
      %p154 = por %p152, %p153
      %p155 = scmp.le.s32.totalorder 1, %s11
      %p156 = scmp.lt.s32.totalorder %s11, 4
      %p157 = pnand %p155, %p156
      %p158 = pneg %p157
      // Predicated region
      $region9: #{receiver_forward.3} parent=5 // pred_check
        _
      $region10: #{receiver_forward.3} parent=5 // pred_check_branch
        %160 = sbr.rel (%p157) target = $region12
      $region11: #{receiver_forward.3} parent=5 // pred_region
        %s161 = ssub.s32 %s11, 1
        // Predicated region
        $region13: #{receiver_forward.3} parent=11 // pred_check
          %p162 = pneg %p58
        $region14: #{receiver_forward.3} parent=11 // pred_check_branch
          %164 = sbr.rel (%p162) target = $region16
        $region15: #{receiver_forward.3} parent=11 // pred_region
          _
        $region16: #{receiver_forward.3} parent=11 // pred_fallthru
          _
        // Predicated region
        $region17: #{receiver_forward.3} parent=11 // pred_check
          %p165 = pneg %p79
        $region18: #{receiver_forward.3} parent=11 // pred_check_branch
          %167 = sbr.rel (%p165) target = $region20
        $region19: #{receiver_forward.3} parent=11 // pred_region
          _
        $region20: #{receiver_forward.3} parent=11 // pred_fallthru
          _
        // Predicated region
        $region21: #{receiver_forward.3} parent=11 // pred_check
          %p168 = pneg %p100
        $region22: #{receiver_forward.3} parent=11 // pred_check_branch
          %170 = sbr.rel (%p168) target = $region24
        $region23: #{receiver_forward.3} parent=11 // pred_region
          _
        $region24: #{receiver_forward.3} parent=11 // pred_fallthru
          _
        // Predicated region
        $region25: #{receiver_forward.3} parent=11 // pred_check
          %p171 = pneg %p121
        $region26: #{receiver_forward.3} parent=11 // pred_check_branch
          %173 = sbr.rel (%p171) target = $region28
        $region27: #{receiver_forward.3} parent=11 // pred_region
          _
        $region28: #{receiver_forward.3} parent=11 // pred_fallthru
          _
      $region12: #{receiver_forward.3} parent=5 // pred_fallthru
        _
      %p174 = scmp.lt.s32.totalorder %s11, 3
      // Predicated region
      $region29: #{receiver_forward.3} parent=5 // pred_check
        %p175 = pneg %p174
      $region30: #{receiver_forward.3} parent=5 // pred_check_branch
        %177 = sbr.rel (%p175) target = $region32
      $region31: #{receiver_forward.3} parent=5 // pred_region
        // Predicated region
        $region33: #{receiver_forward.3} parent=31 // pred_check
          %p178 = pneg %p31
        $region34: #{receiver_forward.3} parent=31 // pred_check_branch
          %180 = sbr.rel (%p178) target = $region36
        $region35: #{receiver_forward.3} parent=31 // pred_region
          %s181 = smul.u32 16, %s11
          %s182 = ssub.s32 38, %s181
          %p183 = scmp.lt.s32.totalorder %s182, 16
          %s184 = scalar_select %p183, %s182, 16
          %s185 = smul.u32 128, %s184
          %p186 = scmp.lt.s32.totalorder %s181, 37
          %s187 = scalar_select %p186, %s181, 37
          %s188 = smul.addr %s187, 8
          %s189 = scalar_lea.vmem %s0, %s188
          %s190 = smul.u32 16, %s11
          %s191 = ssub.s32 38, %s190
          %p192 = scmp.lt.s32.totalorder %s191, 16
          %s193 = scalar_select %p192, %s191, 16
          %s194 = smul.u32 128, %s193
        $region36: #{receiver_forward.3} parent=31 // pred_fallthru
          _
      $region32: #{receiver_forward.3} parent=5 // pred_fallthru
        _
      %p195 = scmp.le.s32.totalorder 1, %s11
      %p196 = scmp.lt.s32.totalorder %s11, 4
      %p197 = pnand %p195, %p196
      %p198 = pneg %p197
      // Predicated region
      $region37: #{receiver_forward.3} parent=5 // pred_check
        _
      $region38: #{receiver_forward.3} parent=5 // pred_check_branch
        %200 = sbr.rel (%p197) target = $region40
      $region39: #{receiver_forward.3} parent=5 // pred_region
        %s201 = ssub.s32 %s11, 1
        %s202 = smul.u32 16, %s16
        %s203 = ssub.s32 38, %s202
        %p204 = scmp.lt.s32.totalorder %s203, 16
        %s205 = scalar_select %p204, %s203, 16
        %s206 = smul.u32 128, %s205
        %p207 = scmp.lt.s32.totalorder %s202, 37
        %s208 = scalar_select %p207, %s202, 37
        %s209 = smul.addr %s208, 8
        %s210 = scalar_lea.vmem %s0, %s209
        %p211 = pneg %p37
        %p212 = pneg %p34
        %p213 = pneg %p58
        %p214 = pneg %p55
        %p215 = pneg %p79
        %p216 = pneg %p76
        %p217 = pneg %p100
        %p218 = pneg %p97
        %p219 = pneg %p121
        %p220 = pneg %p118
        %p221 = pneg %p147
        %p222 = pneg %p144
        %s223 = sand.u32 %s134, 1
        %s224 = sand.u32 %s134, 1
        %s225 = smul.addr %s224, 128
        %s226 = scalar_lea.vmem [#allocation2], %s225
        %s227 = smul.u32 16, %s16
        %s228 = ssub.s32 38, %s227
        %p229 = scmp.lt.s32.totalorder %s228, 16
        %s230 = scalar_select %p229, %s228, 16
        %s231 = smul.u32 128, %s230
        %p232 = scmp.lt.s32.totalorder %s227, 37
        %s233 = scalar_select %p232, %s227, 37
        %s234 = smul.addr %s233, 8
        %s235 = scalar_lea.vmem %s0, %s234
        %s236 = smul.u32 16, %s16
        %s237 = ssub.s32 38, %s236
        %p238 = scmp.lt.s32.totalorder %s237, 16
        %s239 = scalar_select %p238, %s237, 16
        %s240 = smul.u32 128, %s239
        %s241 = smul.u32 16, %s16
        %s242 = ssub.s32 38, %s241
        %p243 = scmp.lt.s32.totalorder %s242, 16
        %s244 = scalar_select %p243, %s242, 16
        %s245 = smul.u32 128, %s244
        %v246 = vld [vmem:[%s235] sm:$0xff]
        %v247 = vld [vmem:[%s235 + $0x8] sm:$0xff]
        %v248 = vld [vmem:[%s235 + $0x10] sm:$0xff]
        %v249 = vld [vmem:[%s235 + $0x18] sm:$0xff]
        %v250 = vld [vmem:[%s235 + $0x20] sm:$0xff]
        %v251 = vld [vmem:[%s235 + $0x28] sm:$0xff]
        %v252 = vld [vmem:[%s235 + $0x30] sm:$0xff]
        %v253 = vld [vmem:[%s235 + $0x38] sm:$0xff]
        %v254 = vld [vmem:[%s235 + $0x40] sm:$0xff]
        %v255 = vld [vmem:[%s235 + $0x48] sm:$0xff]
        %v256 = vld [vmem:[%s235 + $0x50] sm:$0xff]
        %v257 = vld [vmem:[%s235 + $0x58] sm:$0xff]
        %v258 = vld [vmem:[%s235 + $0x60] sm:$0xff]
        %v259 = vld [vmem:[%s235 + $0x68] sm:$0xff]
        %v260 = vld [vmem:[%s235 + $0x70] sm:$0xff]
        %v261 = vld [vmem:[%s235 + $0x78] sm:$0xff]
        %v262 = vld [vmem:[%s1] sm:$0xff]
        %v263 = vld [vmem:[%s1 + $0x8] sm:$0xff]
        %v264 = vld [vmem:[%s2] sm:$0x1]
        %v266 = vlaneseq
        %v267 = vshrl.u32 %v266, 7
        %v268 = vsub.s32 0, %v267
        %v269 = vrot.slane %v264, %v268
        %vm271 = vcmask 130048
        %v273 = vsel %vm271, %v246, 0
        %v276 = vsel %vm271, %v247, 0
        %v279 = vsel %vm271, %v248, 0
        %v282 = vsel %vm271, %v249, 0
        %v285 = vsel %vm271, %v250, 0
        %v288 = vsel %vm271, %v251, 0
        %v291 = vsel %vm271, %v252, 0
        %v294 = vsel %vm271, %v253, 0
        %v297 = vsel %vm271, %v254, 0
        %v300 = vsel %vm271, %v255, 0
        %v303 = vsel %vm271, %v256, 0
        %v306 = vsel %vm271, %v257, 0
        %v309 = vsel %vm271, %v258, 0
        %v312 = vsel %vm271, %v259, 0
        %v315 = vsel %vm271, %v260, 0
        %v318 = vsel %vm271, %v261, 0
        %320 = vmatprep.subr.mxu0 0.0
        %321 = vmatpush1.msra.mxu0 %v262
        %322 = vmatprep.subr.mxu0 0.0
        %323 = vmatpush1.msra.mxu0 %v263
        %324 = vmatprep.subr.mxu0 0.0
        %325 = vmatpush1.msra.mxu0 0.0
        %326 = vmatprep.subr.mxu0 0.0
        %327 = vmatpush1.msra.mxu0 0.0
        %328 = vmatprep.subr.mxu0 0.0
        %329 = vmatpush1.msra.mxu0 0.0
        %330 = vmatprep.subr.mxu0 0.0
        %331 = vmatpush1.msra.mxu0 0.0
        %332 = vmatprep.subr.mxu0 0.0
        %333 = vmatpush1.msra.mxu0 0.0
        %334 = vmatprep.subr.mxu0 0.0
        %335 = vmatpush1.msra.mxu0 0.0
        %336 = vmatprep.subr.mxu0 0.0
        %337 = vmatpush1.msra.mxu0 0.0
        %338 = vmatprep.subr.mxu0 0.0
        %339 = vmatpush1.msra.mxu0 0.0
        %340 = vmatprep.subr.mxu0 0.0
        %341 = vmatpush1.msra.mxu0 0.0
        %342 = vmatprep.subr.mxu0 0.0
        %343 = vmatpush1.msra.mxu0 0.0
        %344 = vmatprep.subr.mxu0 0.0
        %345 = vmatpush1.msra.mxu0 0.0
        %346 = vmatprep.subr.mxu0 0.0
        %347 = vmatpush1.msra.mxu0 0.0
        %348 = vmatprep.subr.mxu0 0.0
        %349 = vmatpush1.msra.mxu0 0.0
        %350 = vmatprep.subr.mxu0 0.0
        %351 = vmatpush1.msra.mxu0 0.0
        %352 = vmatprep.subr.mxu0 0.0
        %353 = vmatpush1.msra.mxu0 0.0
        %354 = vmatprep.subr.mxu0 0.0
        %355 = vmatpush1.msra.mxu0 0.0
        %356 = vmatprep.subr.mxu0 0.0
        %357 = vmatpush1.msra.mxu0 0.0
        %358 = vmatprep.subr.mxu0 0.0
        %359 = vmatpush1.msra.mxu0 0.0
        %360 = vmatprep.subr.mxu0 0.0
        %361 = vmatpush1.msra.mxu0 0.0
        %362 = vmatprep.subr.mxu0 0.0
        %363 = vmatpush1.msra.mxu0 0.0
        %364 = vmatprep.subr.mxu0 0.0
        %365 = vmatpush1.msra.mxu0 0.0
        %366 = vmatprep.subr.mxu0 0.0
        %367 = vmatpush1.msra.mxu0 0.0
        %368 = vmatprep.subr.mxu0 0.0
        %369 = vmatpush1.msra.mxu0 0.0
        %370 = vmatprep.subr.mxu0 0.0
        %371 = vmatpush1.msra.mxu0 0.0
        %372 = vmatprep.subr.mxu0 0.0
        %373 = vmatpush1.msra.mxu0 0.0
        %374 = vmatprep.subr.mxu0 0.0
        %375 = vmatpush1.msra.mxu0 0.0
        %376 = vmatprep.subr.mxu0 0.0
        %377 = vmatpush1.msra.mxu0 0.0
        %378 = vmatprep.subr.mxu0 0.0
        %379 = vmatpush1.msra.mxu0 0.0
        %380 = vmatprep.subr.mxu0 0.0
        %381 = vmatpush1.msra.mxu0 0.0
        %382 = vmatprep.subr.mxu0 0.0
        %383 = vmatpush1.msra.mxu0 0.0
        %384 = vmatprep.mubr.f32.mxu0 0.0
        %385 = vmatmul.mubr.f32.gmra.mrb[0].mxu0 %v273
        %v386 = vpop.f32.mrb[0].mxu0
        %v387 = vadd.f32 %v269, %v386
        %v388 = vpop.f32.mrb[0].mxu0
        %389 = vmatprep.mubr.f32.mxu0 0.0
        %390 = vmatmul.mubr.f32.gmra.mrb[0].mxu0 %v276
        %v391 = vpop.f32.mrb[0].mxu0
        %v392 = vadd.f32 %v269, %v391
        %v393 = vpop.f32.mrb[0].mxu0
        %394 = vmatprep.mubr.f32.mxu0 0.0
        %395 = vmatmul.mubr.f32.gmra.mrb[0].mxu0 %v279
        %v396 = vpop.f32.mrb[0].mxu0
        %v397 = vadd.f32 %v269, %v396
        %v398 = vpop.f32.mrb[0].mxu0
        %399 = vmatprep.mubr.f32.mxu0 0.0
        %400 = vmatmul.mubr.f32.gmra.mrb[0].mxu0 %v282
        %v401 = vpop.f32.mrb[0].mxu0
        %v402 = vadd.f32 %v269, %v401
        %v403 = vpop.f32.mrb[0].mxu0
        %404 = vmatprep.mubr.f32.mxu0 0.0
        %405 = vmatmul.mubr.f32.gmra.mrb[0].mxu0 %v285
        %v406 = vpop.f32.mrb[0].mxu0
        %v407 = vadd.f32 %v269, %v406
        %v408 = vpop.f32.mrb[0].mxu0
        %409 = vmatprep.mubr.f32.mxu0 0.0
        %410 = vmatmul.mubr.f32.gmra.mrb[0].mxu0 %v288
        %v411 = vpop.f32.mrb[0].mxu0
        %v412 = vadd.f32 %v269, %v411
        %v413 = vpop.f32.mrb[0].mxu0
        %414 = vmatprep.mubr.f32.mxu0 0.0
        %415 = vmatmul.mubr.f32.gmra.mrb[0].mxu0 %v291
        %v416 = vpop.f32.mrb[0].mxu0
        %v417 = vadd.f32 %v269, %v416
        %v418 = vpop.f32.mrb[0].mxu0
        %419 = vmatprep.mubr.f32.mxu0 0.0
        %420 = vmatmul.mubr.f32.gmra.mrb[0].mxu0 %v294
        %v421 = vpop.f32.mrb[0].mxu0
        %v422 = vadd.f32 %v269, %v421
        %v423 = vpop.f32.mrb[0].mxu0
        %424 = vmatprep.mubr.f32.mxu0 0.0
        %425 = vmatmul.mubr.f32.gmra.mrb[0].mxu0 %v297
        %v426 = vpop.f32.mrb[0].mxu0
        %v427 = vadd.f32 %v269, %v426
        %v428 = vpop.f32.mrb[0].mxu0
        %429 = vmatprep.mubr.f32.mxu0 0.0
        %430 = vmatmul.mubr.f32.gmra.mrb[0].mxu0 %v300
        %v431 = vpop.f32.mrb[0].mxu0
        %v432 = vadd.f32 %v269, %v431
        %v433 = vpop.f32.mrb[0].mxu0
        %434 = vmatprep.mubr.f32.mxu0 0.0
        %435 = vmatmul.mubr.f32.gmra.mrb[0].mxu0 %v303
        %v436 = vpop.f32.mrb[0].mxu0
        %v437 = vadd.f32 %v269, %v436
        %v438 = vpop.f32.mrb[0].mxu0
        %439 = vmatprep.mubr.f32.mxu0 0.0
        %440 = vmatmul.mubr.f32.gmra.mrb[0].mxu0 %v306
        %v441 = vpop.f32.mrb[0].mxu0
        %v442 = vadd.f32 %v269, %v441
        %v443 = vpop.f32.mrb[0].mxu0
        %444 = vmatprep.mubr.f32.mxu0 0.0
        %445 = vmatmul.mubr.f32.gmra.mrb[0].mxu0 %v309
        %v446 = vpop.f32.mrb[0].mxu0
        %v447 = vadd.f32 %v269, %v446
        %v448 = vpop.f32.mrb[0].mxu0
        %449 = vmatprep.mubr.f32.mxu0 0.0
        %450 = vmatmul.mubr.f32.gmra.mrb[0].mxu0 %v312
        %v451 = vpop.f32.mrb[0].mxu0
        %v452 = vadd.f32 %v269, %v451
        %v453 = vpop.f32.mrb[0].mxu0
        %454 = vmatprep.mubr.f32.mxu0 0.0
        %455 = vmatmul.mubr.f32.gmra.mrb[0].mxu0 %v315
        %v456 = vpop.f32.mrb[0].mxu0
        %v457 = vadd.f32 %v269, %v456
        %v458 = vpop.f32.mrb[0].mxu0
        %459 = vmatprep.mubr.f32.mxu0 0.0
        %460 = vmatmul.mubr.f32.gmra.mrb[0].mxu0 %v318
        %v461 = vpop.f32.mrb[0].mxu0
        %v462 = vadd.f32 %v269, %v461
        %v463 = vpop.f32.mrb[0].mxu0
        %464 = vdwg.mxu0
        %v465 = vmax.f32 %v387, 0.0
        %v466 = vmax.f32 %v392, 0.0
        %v467 = vmax.f32 %v397, 0.0
        %v468 = vmax.f32 %v402, 0.0
        %v469 = vmax.f32 %v407, 0.0
        %v470 = vmax.f32 %v412, 0.0
        %v471 = vmax.f32 %v417, 0.0
        %v472 = vmax.f32 %v422, 0.0
        %v473 = vmax.f32 %v427, 0.0
        %v474 = vmax.f32 %v432, 0.0
        %v475 = vmax.f32 %v437, 0.0
        %v476 = vmax.f32 %v442, 0.0
        %v477 = vmax.f32 %v447, 0.0
        %v478 = vmax.f32 %v452, 0.0
        %v479 = vmax.f32 %v457, 0.0
        %v480 = vmax.f32 %v462, 0.0
        %v481 = vld [vmem:[%s3] sm:$0xff]
        %v482 = vld [vmem:[%s3 + $0x8] sm:$0xff]
        %v483 = vld [vmem:[%s3 + $0x10] sm:$0xff]
        %v484 = vld [vmem:[%s3 + $0x18] sm:$0xff]
        %v485 = vld [vmem:[%s4] sm:$0x1]
        %v487 = vlaneseq
        %v488 = vshrl.u32 %v487, 7
        %v489 = vsub.s32 0, %v488
        %v490 = vrot.slane %v485, %v489
        %vm492 = vcmask 261120
        %v494 = vsel %vm492, %v465, 0
        %v497 = vsel %vm492, %v466, 0
        %v500 = vsel %vm492, %v467, 0
        %v503 = vsel %vm492, %v468, 0
        %v506 = vsel %vm492, %v469, 0
        %v509 = vsel %vm492, %v470, 0
        %v512 = vsel %vm492, %v471, 0
        %v515 = vsel %vm492, %v472, 0
        %v518 = vsel %vm492, %v473, 0
        %v521 = vsel %vm492, %v474, 0
        %v524 = vsel %vm492, %v475, 0
        %v527 = vsel %vm492, %v476, 0
        %v530 = vsel %vm492, %v477, 0
        %v533 = vsel %vm492, %v478, 0
        %v536 = vsel %vm492, %v479, 0
        %v539 = vsel %vm492, %v480, 0
        %541 = vmatprep.subr.mxu0 0.0
        %542 = vmatpush1.msra.mxu0 %v481
        %543 = vmatprep.subr.mxu0 0.0
        %544 = vmatpush1.msra.mxu0 %v482
        %545 = vmatprep.subr.mxu0 0.0
        %546 = vmatpush1.msra.mxu0 %v483
        %547 = vmatprep.subr.mxu0 0.0
        %548 = vmatpush1.msra.mxu0 %v484
        %549 = vmatprep.subr.mxu0 0.0
        %550 = vmatpush1.msra.mxu0 0.0
        %551 = vmatprep.subr.mxu0 0.0
        %552 = vmatpush1.msra.mxu0 0.0
        %553 = vmatprep.subr.mxu0 0.0
        %554 = vmatpush1.msra.mxu0 0.0
        %555 = vmatprep.subr.mxu0 0.0
        %556 = vmatpush1.msra.mxu0 0.0
        %557 = vmatprep.subr.mxu0 0.0
        %558 = vmatpush1.msra.mxu0 0.0
        %559 = vmatprep.subr.mxu0 0.0
        %560 = vmatpush1.msra.mxu0 0.0
        %561 = vmatprep.subr.mxu0 0.0
        %562 = vmatpush1.msra.mxu0 0.0
        %563 = vmatprep.subr.mxu0 0.0
        %564 = vmatpush1.msra.mxu0 0.0
        %565 = vmatprep.subr.mxu0 0.0
        %566 = vmatpush1.msra.mxu0 0.0
        %567 = vmatprep.subr.mxu0 0.0
        %568 = vmatpush1.msra.mxu0 0.0
        %569 = vmatprep.subr.mxu0 0.0
        %570 = vmatpush1.msra.mxu0 0.0
        %571 = vmatprep.subr.mxu0 0.0
        %572 = vmatpush1.msra.mxu0 0.0
        %573 = vmatprep.subr.mxu0 0.0
        %574 = vmatpush1.msra.mxu0 0.0
        %575 = vmatprep.subr.mxu0 0.0
        %576 = vmatpush1.msra.mxu0 0.0
        %577 = vmatprep.subr.mxu0 0.0
        %578 = vmatpush1.msra.mxu0 0.0
        %579 = vmatprep.subr.mxu0 0.0
        %580 = vmatpush1.msra.mxu0 0.0
        %581 = vmatprep.subr.mxu0 0.0
        %582 = vmatpush1.msra.mxu0 0.0
        %583 = vmatprep.subr.mxu0 0.0
        %584 = vmatpush1.msra.mxu0 0.0
        %585 = vmatprep.subr.mxu0 0.0
        %586 = vmatpush1.msra.mxu0 0.0
        %587 = vmatprep.subr.mxu0 0.0
        %588 = vmatpush1.msra.mxu0 0.0
        %589 = vmatprep.subr.mxu0 0.0
        %590 = vmatpush1.msra.mxu0 0.0
        %591 = vmatprep.subr.mxu0 0.0
        %592 = vmatpush1.msra.mxu0 0.0
        %593 = vmatprep.subr.mxu0 0.0
        %594 = vmatpush1.msra.mxu0 0.0
        %595 = vmatprep.subr.mxu0 0.0
        %596 = vmatpush1.msra.mxu0 0.0
        %597 = vmatprep.subr.mxu0 0.0
        %598 = vmatpush1.msra.mxu0 0.0
        %599 = vmatprep.subr.mxu0 0.0
        %600 = vmatpush1.msra.mxu0 0.0
        %601 = vmatprep.subr.mxu0 0.0
        %602 = vmatpush1.msra.mxu0 0.0
        %603 = vmatprep.subr.mxu0 0.0
        %604 = vmatpush1.msra.mxu0 0.0
        %605 = vmatprep.mubr.f32.mxu0 0.0
        %606 = vmatmul.mubr.f32.gmra.mrb[0].mxu0 %v494
        %v607 = vpop.f32.mrb[0].mxu0
        %v608 = vadd.f32 %v490, %v607
        %v609 = vpop.f32.mrb[0].mxu0
        %610 = vmatprep.mubr.f32.mxu0 0.0
        %611 = vmatmul.mubr.f32.gmra.mrb[0].mxu0 %v497
        %v612 = vpop.f32.mrb[0].mxu0
        %v613 = vadd.f32 %v490, %v612
        %v614 = vpop.f32.mrb[0].mxu0
        %615 = vmatprep.mubr.f32.mxu0 0.0
        %616 = vmatmul.mubr.f32.gmra.mrb[0].mxu0 %v500
        %v617 = vpop.f32.mrb[0].mxu0
        %v618 = vadd.f32 %v490, %v617
        %v619 = vpop.f32.mrb[0].mxu0
        %620 = vmatprep.mubr.f32.mxu0 0.0
        %621 = vmatmul.mubr.f32.gmra.mrb[0].mxu0 %v503
        %v622 = vpop.f32.mrb[0].mxu0
        %v623 = vadd.f32 %v490, %v622
        %v624 = vpop.f32.mrb[0].mxu0
        %625 = vmatprep.mubr.f32.mxu0 0.0
        %626 = vmatmul.mubr.f32.gmra.mrb[0].mxu0 %v506
        %v627 = vpop.f32.mrb[0].mxu0
        %v628 = vadd.f32 %v490, %v627
        %v629 = vpop.f32.mrb[0].mxu0
        %630 = vmatprep.mubr.f32.mxu0 0.0
        %631 = vmatmul.mubr.f32.gmra.mrb[0].mxu0 %v509
        %v632 = vpop.f32.mrb[0].mxu0
        %v633 = vadd.f32 %v490, %v632
        %v634 = vpop.f32.mrb[0].mxu0
        %635 = vmatprep.mubr.f32.mxu0 0.0
        %636 = vmatmul.mubr.f32.gmra.mrb[0].mxu0 %v512
        %v637 = vpop.f32.mrb[0].mxu0
        %v638 = vadd.f32 %v490, %v637
        %v639 = vpop.f32.mrb[0].mxu0
        %640 = vmatprep.mubr.f32.mxu0 0.0
        %641 = vmatmul.mubr.f32.gmra.mrb[0].mxu0 %v515
        %v642 = vpop.f32.mrb[0].mxu0
        %v643 = vadd.f32 %v490, %v642
        %v644 = vpop.f32.mrb[0].mxu0
        %645 = vmatprep.mubr.f32.mxu0 0.0
        %646 = vmatmul.mubr.f32.gmra.mrb[0].mxu0 %v518
        %v647 = vpop.f32.mrb[0].mxu0
        %v648 = vadd.f32 %v490, %v647
        %v649 = vpop.f32.mrb[0].mxu0
        %650 = vmatprep.mubr.f32.mxu0 0.0
        %651 = vmatmul.mubr.f32.gmra.mrb[0].mxu0 %v521
        %v652 = vpop.f32.mrb[0].mxu0
        %v653 = vadd.f32 %v490, %v652
        %v654 = vpop.f32.mrb[0].mxu0
        %655 = vmatprep.mubr.f32.mxu0 0.0
        %656 = vmatmul.mubr.f32.gmra.mrb[0].mxu0 %v524
        %v657 = vpop.f32.mrb[0].mxu0
        %v658 = vadd.f32 %v490, %v657
        %v659 = vpop.f32.mrb[0].mxu0
        %660 = vmatprep.mubr.f32.mxu0 0.0
        %661 = vmatmul.mubr.f32.gmra.mrb[0].mxu0 %v527
        %v662 = vpop.f32.mrb[0].mxu0
        %v663 = vadd.f32 %v490, %v662
        %v664 = vpop.f32.mrb[0].mxu0
        %665 = vmatprep.mubr.f32.mxu0 0.0
        %666 = vmatmul.mubr.f32.gmra.mrb[0].mxu0 %v530
        %v667 = vpop.f32.mrb[0].mxu0
        %v668 = vadd.f32 %v490, %v667
        %v669 = vpop.f32.mrb[0].mxu0
        %670 = vmatprep.mubr.f32.mxu0 0.0
        %671 = vmatmul.mubr.f32.gmra.mrb[0].mxu0 %v533
        %v672 = vpop.f32.mrb[0].mxu0
        %v673 = vadd.f32 %v490, %v672
        %v674 = vpop.f32.mrb[0].mxu0
        %675 = vmatprep.mubr.f32.mxu0 0.0
        %676 = vmatmul.mubr.f32.gmra.mrb[0].mxu0 %v536
        %v677 = vpop.f32.mrb[0].mxu0
        %v678 = vadd.f32 %v490, %v677
        %v679 = vpop.f32.mrb[0].mxu0
        %680 = vmatprep.mubr.f32.mxu0 0.0
        %681 = vmatmul.mubr.f32.gmra.mrb[0].mxu0 %v539
        %v682 = vpop.f32.mrb[0].mxu0
        %v683 = vadd.f32 %v490, %v682
        %v684 = vpop.f32.mrb[0].mxu0
        %685 = vdwg.mxu0
        %v686 = vxor.u32 %v608, 2147483648
        %v687 = vxor.u32 %v613, 2147483648
        %v688 = vxor.u32 %v618, 2147483648
        %v689 = vxor.u32 %v623, 2147483648
        %v690 = vxor.u32 %v628, 2147483648
        %v691 = vxor.u32 %v633, 2147483648
        %v692 = vxor.u32 %v638, 2147483648
        %v693 = vxor.u32 %v643, 2147483648
        %v694 = vxor.u32 %v648, 2147483648
        %v695 = vxor.u32 %v653, 2147483648
        %v696 = vxor.u32 %v658, 2147483648
        %v697 = vxor.u32 %v663, 2147483648
        %v698 = vxor.u32 %v668, 2147483648
        %v699 = vxor.u32 %v673, 2147483648
        %v700 = vxor.u32 %v678, 2147483648
        %v701 = vxor.u32 %v683, 2147483648
        %v702 = vmul.f32 %v686, 1.442695
        %v703 = vpow.pop %v702
        %v704 = vmul.f32 %v687, 1.442695
        %v705 = vpow.pop %v704
        %v706 = vmul.f32 %v688, 1.442695
        %v707 = vpow.pop %v706
        %v708 = vmul.f32 %v689, 1.442695
        %v709 = vpow.pop %v708
        %v710 = vmul.f32 %v690, 1.442695
        %v711 = vpow.pop %v710
        %v712 = vmul.f32 %v691, 1.442695
        %v713 = vpow.pop %v712
        %v714 = vmul.f32 %v692, 1.442695
        %v715 = vpow.pop %v714
        %v716 = vmul.f32 %v693, 1.442695
        %v717 = vpow.pop %v716
        %v718 = vmul.f32 %v694, 1.442695
        %v719 = vpow.pop %v718
        %v720 = vmul.f32 %v695, 1.442695
        %v721 = vpow.pop %v720
        %v722 = vmul.f32 %v696, 1.442695
        %v723 = vpow.pop %v722
        %v724 = vmul.f32 %v697, 1.442695
        %v725 = vpow.pop %v724
        %v726 = vmul.f32 %v698, 1.442695
        %v727 = vpow.pop %v726
        %v728 = vmul.f32 %v699, 1.442695
        %v729 = vpow.pop %v728
        %v730 = vmul.f32 %v700, 1.442695
        %v731 = vpow.pop %v730
        %v732 = vmul.f32 %v701, 1.442695
        %v733 = vpow.pop %v732
        %v734 = vadd.f32 %v703, 1.0
        %v735 = vadd.f32 %v705, 1.0
        %v736 = vadd.f32 %v707, 1.0
        %v737 = vadd.f32 %v709, 1.0
        %v738 = vadd.f32 %v711, 1.0
        %v739 = vadd.f32 %v713, 1.0
        %v740 = vadd.f32 %v715, 1.0
        %v741 = vadd.f32 %v717, 1.0
        %v742 = vadd.f32 %v719, 1.0
        %v743 = vadd.f32 %v721, 1.0
        %v744 = vadd.f32 %v723, 1.0
        %v745 = vadd.f32 %v725, 1.0
        %v746 = vadd.f32 %v727, 1.0
        %v747 = vadd.f32 %v729, 1.0
        %v748 = vadd.f32 %v731, 1.0
        %v749 = vadd.f32 %v733, 1.0
        %v750 = vrcp.pop %v734
        %v751 = vmul.f32 1.0, %v750
        %v752 = vrcp.pop %v735
        %v753 = vmul.f32 1.0, %v752
        %v754 = vrcp.pop %v736
        %v755 = vmul.f32 1.0, %v754
        %v756 = vrcp.pop %v737
        %v757 = vmul.f32 1.0, %v756
        %v758 = vrcp.pop %v738
        %v759 = vmul.f32 1.0, %v758
        %v760 = vrcp.pop %v739
        %v761 = vmul.f32 1.0, %v760
        %v762 = vrcp.pop %v740
        %v763 = vmul.f32 1.0, %v762
        %v764 = vrcp.pop %v741
        %v765 = vmul.f32 1.0, %v764
        %v766 = vrcp.pop %v742
        %v767 = vmul.f32 1.0, %v766
        %v768 = vrcp.pop %v743
        %v769 = vmul.f32 1.0, %v768
        %v770 = vrcp.pop %v744
        %v771 = vmul.f32 1.0, %v770
        %v772 = vrcp.pop %v745
        %v773 = vmul.f32 1.0, %v772
        %v774 = vrcp.pop %v746
        %v775 = vmul.f32 1.0, %v774
        %v776 = vrcp.pop %v747
        %v777 = vmul.f32 1.0, %v776
        %v778 = vrcp.pop %v748
        %v779 = vmul.f32 1.0, %v778
        %v780 = vrcp.pop %v749
        %v781 = vmul.f32 1.0, %v780
        %vm782 = vcmask 64512
        %783 = vst.msk [vmem:[%s226] sm:$0xff] %vm782, %v751
        %784 = vst.msk [vmem:[%s226 + $0x8] sm:$0xff] %vm782, %v753
        %785 = vst.msk [vmem:[%s226 + $0x10] sm:$0xff] %vm782, %v755
        %786 = vst.msk [vmem:[%s226 + $0x18] sm:$0xff] %vm782, %v757
        %787 = vst.msk [vmem:[%s226 + $0x20] sm:$0xff] %vm782, %v759
        %788 = vst.msk [vmem:[%s226 + $0x28] sm:$0xff] %vm782, %v761
        %789 = vst.msk [vmem:[%s226 + $0x30] sm:$0xff] %vm782, %v763
        %790 = vst.msk [vmem:[%s226 + $0x38] sm:$0xff] %vm782, %v765
        %791 = vst.msk [vmem:[%s226 + $0x40] sm:$0xff] %vm782, %v767
        %792 = vst.msk [vmem:[%s226 + $0x48] sm:$0xff] %vm782, %v769
        %793 = vst.msk [vmem:[%s226 + $0x50] sm:$0xff] %vm782, %v771
        %794 = vst.msk [vmem:[%s226 + $0x58] sm:$0xff] %vm782, %v773
        %795 = vst.msk [vmem:[%s226 + $0x60] sm:$0xff] %vm782, %v775
        %796 = vst.msk [vmem:[%s226 + $0x68] sm:$0xff] %vm782, %v777
        %797 = vst.msk [vmem:[%s226 + $0x70] sm:$0xff] %vm782, %v779
        %798 = vst.msk [vmem:[%s226 + $0x78] sm:$0xff] %vm782, %v781
        %s799 = sand.u32 %s134, 1
        %s800 = sand.u32 %s134, 1
        %s801 = smul.addr %s800, 128
        %s802 = scalar_lea.vmem [#allocation2], %s801
        // Predicated region
        $region41: #{receiver_forward.3} parent=39 // pred_check
          %p803 = pneg %p144
        $region42: #{receiver_forward.3} parent=39 // pred_check_branch
          %805 = sbr.rel (%p803) target = $region44
        $region43: #{receiver_forward.3} parent=39 // pred_region
          %s806 = smul.u32 16, %s16
          %s807 = ssub.s32 38, %s806
          %p808 = scmp.lt.s32.totalorder %s807, 16
          %s809 = scalar_select %p808, %s807, 16
          %s810 = smul.u32 128, %s809
          %p811 = scmp.ne.s32.totalorder 0, %s810
          %s812 = smul.addr %s806, 8
          %s813 = scalar_lea.vmem %s5, %s812
          // Predicated region
          $region45: #{receiver_forward.3} parent=43 // pred_check
            %p814 = pneg %p811
          $region46: #{receiver_forward.3} parent=43 // pred_check_branch
            %816 = sbr.rel (%p814) target = $region48
          $region47: #{receiver_forward.3} parent=43 // pred_region
            // Predicated region
            $region49: #{receiver_forward.3} parent=47 // pred_check
              _
            $region50: #{receiver_forward.3} parent=47 // pred_check_branch
              %818 = sbr.rel (0) target = $region52
            $region51: #{receiver_forward.3} parent=47 // pred_region
              // Predicated region
              $region71: #{receiver_forward.3} parent=51 // pred_check
                _
              $region72: #{receiver_forward.3} parent=51 // pred_check_branch
                %897 = sbr.rel (0) target = $region74
              $region73: #{receiver_forward.3} parent=51 // pred_region
                %s898 = sshrl.u32 %s809, 4
                // While loop
                $region75: #{receiver_forward.3} parent=73 // loop_pre_header
                  _
                $region76: #{receiver_forward.3} parent=73 // loop_header
                  %s900 = sphi 0, %s902
                  %p901 = scmp.ge.s32.totalorder %s900, %s898
                  %s905 = sphi 0, %s942
                  %s906 = sphi %s802, %s945
                  %s907 = sphi %s813, %s946
                $region77: #{receiver_forward.3} parent=73 // loop_header_branch
                  %904 = sbr.rel (%p901) target = $region81
                $region78: #{receiver_forward.3} parent=73 // loop_body
                  %v908 = vld [vmem:[%s906] sm:$0xff]
                  %909 = vst [vmem:[%s907] sm:$0xff] %v908
                  %v910 = vld [vmem:[%s906 + $0x8] sm:$0xff]
                  %911 = vst [vmem:[%s907 + $0x8] sm:$0xff] %v910
                  %v912 = vld [vmem:[%s906 + $0x10] sm:$0xff]
                  %913 = vst [vmem:[%s907 + $0x10] sm:$0xff] %v912
                  %v914 = vld [vmem:[%s906 + $0x18] sm:$0xff]
                  %915 = vst [vmem:[%s907 + $0x18] sm:$0xff] %v914
                  %v916 = vld [vmem:[%s906 + $0x20] sm:$0xff]
                  %917 = vst [vmem:[%s907 + $0x20] sm:$0xff] %v916
                  %v918 = vld [vmem:[%s906 + $0x28] sm:$0xff]
                  %919 = vst [vmem:[%s907 + $0x28] sm:$0xff] %v918
                  %v920 = vld [vmem:[%s906 + $0x30] sm:$0xff]
                  %921 = vst [vmem:[%s907 + $0x30] sm:$0xff] %v920
                  %v922 = vld [vmem:[%s906 + $0x38] sm:$0xff]
                  %923 = vst [vmem:[%s907 + $0x38] sm:$0xff] %v922
                  %v924 = vld [vmem:[%s906 + $0x40] sm:$0xff]
                  %925 = vst [vmem:[%s907 + $0x40] sm:$0xff] %v924
                  %v926 = vld [vmem:[%s906 + $0x48] sm:$0xff]
                  %927 = vst [vmem:[%s907 + $0x48] sm:$0xff] %v926
                  %v928 = vld [vmem:[%s906 + $0x50] sm:$0xff]
                  %929 = vst [vmem:[%s907 + $0x50] sm:$0xff] %v928
                  %v930 = vld [vmem:[%s906 + $0x58] sm:$0xff]
                  %931 = vst [vmem:[%s907 + $0x58] sm:$0xff] %v930
                  %v932 = vld [vmem:[%s906 + $0x60] sm:$0xff]
                  %933 = vst [vmem:[%s907 + $0x60] sm:$0xff] %v932
                  %v934 = vld [vmem:[%s906 + $0x68] sm:$0xff]
                  %935 = vst [vmem:[%s907 + $0x68] sm:$0xff] %v934
                  %v936 = vld [vmem:[%s906 + $0x70] sm:$0xff]
                  %937 = vst [vmem:[%s907 + $0x70] sm:$0xff] %v936
                  %v938 = vld [vmem:[%s906 + $0x78] sm:$0xff]
                  %939 = vst [vmem:[%s907 + $0x78] sm:$0xff] %v938
                  %s940 = sadd.s32 1, %s905
                  %p941 = scmp.ge.s32.totalorder %s940, %s898
                  %s942 = scalar_select %p941, 0, %s940
                  %s943 = smul.u32 %s942, 128
                  %s944 = smul.u32 %s942, 128
                  %s945 = scalar_lea.vmem %s802, %s943 [#allocation2]
                  %s946 = scalar_lea.vmem %s813, %s944
                $region79: #{receiver_forward.3} parent=73 // loop_footer
                  %s902 = sadd.s32 %s900, 1
                $region80: #{receiver_forward.3} parent=73 // loop_footer_branch
                  %899 = sbr.rel target = $region76
                $region81: #{receiver_forward.3} parent=73 // loop_exit
                  _
                %s947 = sshrl.u32 %s809, 4
                %s948 = sand.u32 %s809, 15
                %s949 = smul.u32 %s947, 16
                %s950 = smul.u32 8, %s949
                %s951 = scalar_lea.vmem %s802, %s950 [#allocation2]
                %s952 = smul.u32 8, %s949
                %s953 = scalar_lea.vmem %s813, %s952
                // While loop
                $region82: #{receiver_forward.3} parent=73 // loop_pre_header
                  _
                $region83: #{receiver_forward.3} parent=73 // loop_header
                  %s955 = sphi 0, %s957
                  %p956 = scmp.ge.s32.totalorder %s955, %s948
                  %s960 = sphi 0, %s967
                  %s961 = sphi %s951, %s970
                  %s962 = sphi %s953, %s971
                $region84: #{receiver_forward.3} parent=73 // loop_header_branch
                  %959 = sbr.rel (%p956) target = $region88
                $region85: #{receiver_forward.3} parent=73 // loop_body
                  %v963 = vld [vmem:[%s961] sm:$0xff]
                  %964 = vst [vmem:[%s962] sm:$0xff] %v963
                  %s965 = sadd.s32 1, %s960
                  %p966 = scmp.ge.s32.totalorder %s965, %s948
                  %s967 = scalar_select %p966, 0, %s965
                  %s968 = smul.u32 %s967, 8
                  %s969 = smul.u32 %s967, 8
                  %s970 = scalar_lea.vmem %s951, %s968 [#allocation2]
                  %s971 = scalar_lea.vmem %s953, %s969
                $region86: #{receiver_forward.3} parent=73 // loop_footer
                  %s957 = sadd.s32 %s955, 1
                $region87: #{receiver_forward.3} parent=73 // loop_footer_branch
                  %954 = sbr.rel target = $region83
                $region88: #{receiver_forward.3} parent=73 // loop_exit
                  _
              $region74: #{receiver_forward.3} parent=51 // pred_fallthru
                _
              // Predicated region
              $region89: #{receiver_forward.3} parent=51 // pred_check
                _
              $region90: #{receiver_forward.3} parent=51 // pred_check_branch
                %973 = sbr.rel target = $region92
              $region91: #{receiver_forward.3} parent=51 // pred_region
                _
              $region92: #{receiver_forward.3} parent=51 // pred_fallthru
                _
            $region52: #{receiver_forward.3} parent=47 // pred_fallthru
              _
            // Predicated region
            $region53: #{receiver_forward.3} parent=47 // pred_check
              _
            $region54: #{receiver_forward.3} parent=47 // pred_check_branch
              %820 = sbr.rel target = $region56
            $region55: #{receiver_forward.3} parent=47 // pred_region
              %s822 = sshrl.u32 %s809, 4
              // While loop
              $region57: #{receiver_forward.3} parent=55 // loop_pre_header
                _
              $region58: #{receiver_forward.3} parent=55 // loop_header
                %s824 = sphi 0, %s826
                %p825 = scmp.ge.s32.totalorder %s824, %s822
                %s829 = sphi 0, %s866
                %s830 = sphi %s802, %s869
                %s831 = sphi %s813, %s870
              $region59: #{receiver_forward.3} parent=55 // loop_header_branch
                %828 = sbr.rel (%p825) target = $region63
              $region60: #{receiver_forward.3} parent=55 // loop_body
                %v832 = vld [vmem:[%s830] sm:$0xff]
                %833 = vst [vmem:[%s831] sm:$0xff] %v832
                %v834 = vld [vmem:[%s830 + $0x8] sm:$0xff]
                %835 = vst [vmem:[%s831 + $0x8] sm:$0xff] %v834
                %v836 = vld [vmem:[%s830 + $0x10] sm:$0xff]
                %837 = vst [vmem:[%s831 + $0x10] sm:$0xff] %v836
                %v838 = vld [vmem:[%s830 + $0x18] sm:$0xff]
                %839 = vst [vmem:[%s831 + $0x18] sm:$0xff] %v838
                %v840 = vld [vmem:[%s830 + $0x20] sm:$0xff]
                %841 = vst [vmem:[%s831 + $0x20] sm:$0xff] %v840
                %v842 = vld [vmem:[%s830 + $0x28] sm:$0xff]
                %843 = vst [vmem:[%s831 + $0x28] sm:$0xff] %v842
                %v844 = vld [vmem:[%s830 + $0x30] sm:$0xff]
                %845 = vst [vmem:[%s831 + $0x30] sm:$0xff] %v844
                %v846 = vld [vmem:[%s830 + $0x38] sm:$0xff]
                %847 = vst [vmem:[%s831 + $0x38] sm:$0xff] %v846
                %v848 = vld [vmem:[%s830 + $0x40] sm:$0xff]
                %849 = vst [vmem:[%s831 + $0x40] sm:$0xff] %v848
                %v850 = vld [vmem:[%s830 + $0x48] sm:$0xff]
                %851 = vst [vmem:[%s831 + $0x48] sm:$0xff] %v850
                %v852 = vld [vmem:[%s830 + $0x50] sm:$0xff]
                %853 = vst [vmem:[%s831 + $0x50] sm:$0xff] %v852
                %v854 = vld [vmem:[%s830 + $0x58] sm:$0xff]
                %855 = vst [vmem:[%s831 + $0x58] sm:$0xff] %v854
                %v856 = vld [vmem:[%s830 + $0x60] sm:$0xff]
                %857 = vst [vmem:[%s831 + $0x60] sm:$0xff] %v856
                %v858 = vld [vmem:[%s830 + $0x68] sm:$0xff]
                %859 = vst [vmem:[%s831 + $0x68] sm:$0xff] %v858
                %v860 = vld [vmem:[%s830 + $0x70] sm:$0xff]
                %861 = vst [vmem:[%s831 + $0x70] sm:$0xff] %v860
                %v862 = vld [vmem:[%s830 + $0x78] sm:$0xff]
                %863 = vst [vmem:[%s831 + $0x78] sm:$0xff] %v862
                %s864 = sadd.s32 1, %s829
                %p865 = scmp.ge.s32.totalorder %s864, %s822
                %s866 = scalar_select %p865, 0, %s864
                %s867 = smul.u32 %s866, 128
                %s868 = smul.u32 %s866, 128
                %s869 = scalar_lea.vmem %s802, %s867 [#allocation2]
                %s870 = scalar_lea.vmem %s813, %s868
              $region61: #{receiver_forward.3} parent=55 // loop_footer
                %s826 = sadd.s32 %s824, 1
              $region62: #{receiver_forward.3} parent=55 // loop_footer_branch
                %823 = sbr.rel target = $region58
              $region63: #{receiver_forward.3} parent=55 // loop_exit
                _
              %s871 = sshrl.u32 %s809, 4
              %s872 = sand.u32 %s809, 15
              %s873 = smul.u32 %s871, 16
              %s874 = smul.u32 8, %s873
              %s875 = scalar_lea.vmem %s802, %s874 [#allocation2]
              %s876 = smul.u32 8, %s873
              %s877 = scalar_lea.vmem %s813, %s876
              // While loop
              $region64: #{receiver_forward.3} parent=55 // loop_pre_header
                _
              $region65: #{receiver_forward.3} parent=55 // loop_header
                %s879 = sphi 0, %s881
                %p880 = scmp.ge.s32.totalorder %s879, %s872
                %s884 = sphi 0, %s891
                %s885 = sphi %s875, %s894
                %s886 = sphi %s877, %s895
              $region66: #{receiver_forward.3} parent=55 // loop_header_branch
                %883 = sbr.rel (%p880) target = $region70
              $region67: #{receiver_forward.3} parent=55 // loop_body
                %v887 = vld [vmem:[%s885] sm:$0xff]
                %888 = vst [vmem:[%s886] sm:$0xff] %v887
                %s889 = sadd.s32 1, %s884
                %p890 = scmp.ge.s32.totalorder %s889, %s872
                %s891 = scalar_select %p890, 0, %s889
                %s892 = smul.u32 %s891, 8
                %s893 = smul.u32 %s891, 8
                %s894 = scalar_lea.vmem %s875, %s892 [#allocation2]
                %s895 = scalar_lea.vmem %s877, %s893
              $region68: #{receiver_forward.3} parent=55 // loop_footer
                %s881 = sadd.s32 %s879, 1
              $region69: #{receiver_forward.3} parent=55 // loop_footer_branch
                %878 = sbr.rel target = $region65
              $region70: #{receiver_forward.3} parent=55 // loop_exit
                _
            $region56: #{receiver_forward.3} parent=47 // pred_fallthru
              _
          $region48: #{receiver_forward.3} parent=43 // pred_fallthru
            _
          %974 = vnop
        $region44: #{receiver_forward.3} parent=39 // pred_fallthru
          _
      $region40: #{receiver_forward.3} parent=5 // pred_fallthru
        _
      %p975 = scmp.le.s32.totalorder 2, %s11
      // Predicated region
      $region93: #{receiver_forward.3} parent=5 // pred_check
        %p976 = pneg %p975
      $region94: #{receiver_forward.3} parent=5 // pred_check_branch
        %978 = sbr.rel (%p976) target = $region96
      $region95: #{receiver_forward.3} parent=5 // pred_region
        %s979 = ssub.s32 %s11, 2
        // Predicated region
        $region97: #{receiver_forward.3} parent=95 // pred_check
          %p980 = pneg %p150
        $region98: #{receiver_forward.3} parent=95 // pred_check_branch
          %982 = sbr.rel (%p980) target = $region100
        $region99: #{receiver_forward.3} parent=95 // pred_region
          %s983 = sand.u32 %s135, 1
          %s984 = sand.u32 %s135, 1
          %s985 = smul.addr %s984, 128
          %s986 = scalar_lea.vmem [#allocation2], %s985
        $region100: #{receiver_forward.3} parent=95 // pred_fallthru
          _
      $region96: #{receiver_forward.3} parent=5 // pred_fallthru
        _
    $region6: #{receiver_forward.3} parent=1 // loop_footer
      %s15 = sadd.s32 1, %s11
    $region7: #{receiver_forward.3} parent=1 // loop_footer_branch
      %10 = sbr.rel target = $region3
    $region8: #{receiver_forward.3} parent=1 // loop_exit
      _

</llo_original>
